<compile_context>
chip_gen: v6e
topology: v6e:2x2x1
jax: 0.10.0
libtpu: 0.0.40
codegen_flags: <defaults>
</compile_context>

<pallas_src>
import math
import numpy as np

import jax
import jax.numpy as jnp
from jax.experimental import pallas as pl
from jax.experimental.pallas import tpu as pltpu

# ---------------- small-scale Whisper-analogue constants ----------------
SAMPLE_RATE = 16000
N_FFT = 64
HOP_LENGTH = 32                         # N_FFT // 2 -> every frame is exactly 2 hop-chunks
N_FREQ = N_FFT // 2 + 1                 # 33 one-sided frequency bins
N_MELS = 16
N_SAMPLES = 2048                        # zero padding appended (Whisper: 30s*sr)
N_FRAMES = N_SAMPLES // HOP_LENGTH      # 64 mel frames kept after pad_or_trim
ATTACK_SIZE = 256                       # analogue of attack_size=5120
D_MODEL = 32
VOCAB = 128
SOT_IDS = (1, 5, 9, 13)                 # synthetic sot_sequence_including_notimestamps

# lane-dense padded sizes (all matmul operands are (8,128)-friendly)
DFT_PAD = 64                            # width of the cos block / sin block (>= N_FREQ)
DFT_WIDTH = 2 * DFT_PAD                 # 128 = [cos | sin] concatenated
MEL_PAD = 128                           # mel feature dim zero-padded to a full lane tile

_ATT_SCALE = 1.0 / math.sqrt(D_MODEL)


# ---------------- deterministic mel front-end matrices ----------------
def _hz_to_mel(f):
    return 2595.0 * np.log10(1.0 + f / 700.0)


def _mel_to_hz(m):
    return 700.0 * (10.0 ** (m / 2595.0) - 1.0)


def mel_filterbank(n_mels, n_fft, sr):
    """Triangular mel filterbank [n_mels, n_freq] (stand-in for Whisper's asset)."""
    n_freq = n_fft // 2 + 1
    freqs = np.linspace(0.0, sr / 2.0, n_freq)
    mel_pts = np.linspace(_hz_to_mel(0.0), _hz_to_mel(sr / 2.0), n_mels + 2)
    hz_pts = _mel_to_hz(mel_pts)
    fb = np.zeros((n_mels, n_freq), dtype=np.float32)
    for m in range(n_mels):
        lo, ce, hi = hz_pts[m], hz_pts[m + 1], hz_pts[m + 2]
        up = (freqs - lo) / max(ce - lo, 1e-6)
        down = (hi - freqs) / max(hi - ce, 1e-6)
        fb[m] = np.maximum(0.0, np.minimum(up, down)).astype(np.float32)
    return fb


# ---------------- kernel 1: fused mel front-end (in-kernel STFT framing) ----------------
def _mel_frontend_kernel(chunks_ref, cossin_ref, fb2_ref, logspec_ref, rowmax_ref):
    # chunks_ref: [n_chunks, HOP] f32 — one batch row of the padded audio in hop-chunk layout
    # cossin_ref: [N_FFT, 128] bf16  — Hann window folded in host-side
    #   (cols [0:33]=win*cos, [64:97]=win*(+sin); +sin is harmless, only power re^2+im^2 is used)
    # fb2_ref:    [128, 128] bf16    — mel filterbank duplicated for the cos/sin halves
    T = logspec_ref.shape[0]                           # frames kept for this row
    c = chunks_ref[...].astype(jnp.bfloat16)           # [n_chunks, HOP]
    cw = cossin_ref[...]
    w_lo = cw[:HOP_LENGTH, :]                          # acts on the first half of each frame
    w_hi = cw[HOP_LENGTH:, :]                          # acts on the second half (next hop-chunk)
    # frame t = [chunk_t | chunk_{t+1}]  =>  DFT(frame_t) = chunk_t @ w_lo + chunk_{t+1} @ w_hi
    cs = (jnp.dot(c[:T, :], w_lo, preferred_element_type=jnp.float32) +
          jnp.dot(c[1:T + 1, :], w_hi, preferred_element_type=jnp.float32))    # [T, 128]
    power = cs * cs                                                             # re^2 & im^2 halves
    mel = jnp.dot(power.astype(jnp.bfloat16), fb2_ref[...],
                  preferred_element_type=jnp.float32)                           # [T, 128]; cols >= N_MELS are 0
    log_spec = jnp.log10(jnp.maximum(mel, 1e-10))                               # padded cols == -10 (<= real max)
    logspec_ref[...] = log_spec.astype(jnp.bfloat16)                            # bf16 writeback (mem-bound)
    rowmax_ref[...] = jnp.broadcast_to(
        jnp.max(log_spec, axis=0, keepdims=True), (8, MEL_PAD))                 # per-row partial max


def mel_frontend_pallas(chunks, cossin_w, fb2):
    # TODO(synk): at real Whisper scale (T=3000 frames/row), also tile the frame axis
    #             per grid step to bound per-step VMEM and deepen the pipeline.
    B, n_chunks, hop = chunks.shape
    T = n_chunks - 2                                   # stft[..., :-1] drops the last frame
    return pl.pallas_call(
        _mel_frontend_kernel,
        out_shape=(jax.ShapeDtypeStruct((B, T, MEL_PAD), jnp.bfloat16),
                   jax.ShapeDtypeStruct((B, 8, MEL_PAD), jnp.float32)),
        grid=(B,),
        in_specs=[
            pl.BlockSpec((None, n_chunks, hop), lambda b: (b, 0, 0)),
            pl.BlockSpec((N_FFT, DFT_WIDTH), lambda b: (0, 0)),
            pl.BlockSpec((DFT_WIDTH, MEL_PAD), lambda b: (0, 0)),
        ],
        out_specs=[
            pl.BlockSpec((None, T, MEL_PAD), lambda b: (b, 0, 0)),
            pl.BlockSpec((None, 8, MEL_PAD), lambda b: (b, 0, 0)),
        ],
        compiler_params=pltpu.CompilerParams(dimension_semantics=("parallel",)),
    )(chunks, cossin_w, fb2)


# ---------------- kernel 2: normalize + trim + whisper-lite encoder/decoder ----------------
def _normalize_decode_kernel(gmax_ref, mel_ref, dec_ref, wenc_ref, encb_ref, wout_ref, out_ref):
    # gmax_ref: (1,) f32 SMEM — global max of the full (pre-trim) log-mel spectrogram
    # mel_ref:  [Bt, N_FRAMES, 128] bf16 raw log10 mel (trim to N_FRAMES done via BlockSpec)
    # dec_ref:  [Bt, S, D] bf16
    # wenc_ref: [128, D] bf16 = 0.25 * w_enc_pad   ((x+4)/4 scale folded into the weight)
    # encb_ref: [1, D]  f32  = colsum(w_enc_pad)   ((x+4)/4 shift folded into a bias)
    # wout_ref: [D, VOCAB] bf16
    Bt, T, _ = mel_ref.shape
    S = dec_ref.shape[1]
    floor = (gmax_ref[0] - 8.0).astype(jnp.bfloat16)
    melc = jnp.maximum(mel_ref[...], floor)                                     # only the gmax-dependent clamp stays
    enc = jnp.tanh(jnp.dot(melc.reshape(Bt * T, MEL_PAD), wenc_ref[...],
                           preferred_element_type=jnp.float32) + encb_ref[...])  # [Bt*T, D]
    enc3 = enc.astype(jnp.bfloat16).reshape(Bt, T, D_MODEL)
    dec = dec_ref[...].astype(jnp.float32)                                      # [Bt, S, D]
    q = (dec * _ATT_SCALE).astype(jnp.bfloat16)
    att = jnp.einsum('bsd,btd->bst', q, enc3, preferred_element_type=jnp.float32)
    att = att - jnp.max(att, axis=-1, keepdims=True)
    p = jnp.exp(att)
    p = p / jnp.sum(p, axis=-1, keepdims=True)                                  # exact softmax (parity w/ torch)
    ctx = jnp.einsum('bst,btd->bsd', p.astype(jnp.bfloat16), enc3,
                     preferred_element_type=jnp.float32)                        # [Bt, S, D]
    h = (dec + ctx).astype(jnp.bfloat16).reshape(Bt * S, D_MODEL)
    out_ref[...] = jnp.dot(h, wout_ref[...], preferred_element_type=jnp.float32)  # [Bt*S, VOCAB]


def normalize_decode_pallas(gmax, mel3, dec_emb, w_enc_scaled, enc_bias, w_out):
    B, T_full, _ = mel3.shape
    S = dec_emb.shape[1]
    assert T_full >= N_FRAMES, "pad_or_trim: only the trim path is implemented"
    # fold as many batch rows as possible into one grid step: >= 8 output rows per
    # step gives unmasked (full-sublane) stores and amortizes per-step overhead.
    Bt = 1
    for d in range(1, B + 1):
        if B % d == 0 and d * S <= 8:
            Bt = d
    out = pl.pallas_call(
        _normalize_decode_kernel,
        out_shape=jax.ShapeDtypeStruct((B * S, VOCAB), jnp.float32),
        grid=(B // Bt,),
        in_specs=[
            pl.BlockSpec(memory_space=pltpu.MemorySpace.SMEM),                   # global-max scalar
            pl.BlockSpec((Bt, N_FRAMES, MEL_PAD), lambda g: (g, 0, 0)),          # trim: first 64 of 80 frames
            pl.BlockSpec((Bt, S, D_MODEL), lambda g: (g, 0, 0)),
            pl.BlockSpec((MEL_PAD, D_MODEL), lambda g: (0, 0)),
            pl.BlockSpec((1, D_MODEL), lambda g: (0, 0)),
            pl.BlockSpec((D_MODEL, VOCAB), lambda g: (0, 0)),
        ],
        out_specs=pl.BlockSpec((Bt * S, VOCAB), lambda g: (g, 0)),
        compiler_params=pltpu.CompilerParams(dimension_semantics=("parallel",)),
    )(gmax, mel3, dec_emb, w_enc_scaled, enc_bias, w_out)
    return out.reshape(B, S, VOCAB)


# ---------------- module wrapper ----------------
class AudioAttackModelWrapperPallas:
    """JAX/Pallas port of AudioAttackModelWrapper.forward (attack_init='random')."""

    def __init__(self, key, attack_size=ATTACK_SIZE):
        self.attack_size = attack_size
        k1, k2, k3, k4 = jax.random.split(key, 4)
        # nn.Parameter(torch.rand(attack_size)) -> uniform[0,1)
        self.audio_attack_segment = jax.random.uniform(k1, (attack_size,), dtype=jnp.float32)

        # fixed mel front-end; Hann window is folded into the DFT matrix host-side,
        # so kernel 1 has no elementwise preamble and no window input stream.
        n = np.arange(N_FFT)
        win = (0.5 - 0.5 * np.cos(2.0 * np.pi * n / N_FFT)).astype(np.float64)
        kk = n[:, None].astype(np.float64)
        ff = np.arange(N_FREQ)[None, :].astype(np.float64)
        ang = 2.0 * np.pi * kk * ff / N_FFT
        cossin = np.zeros((N_FFT, DFT_WIDTH), dtype=np.float64)
        cossin[:, :N_FREQ] = np.cos(ang)
        cossin[:, DFT_PAD:DFT_PAD + N_FREQ] = np.sin(ang)   # +sin: only power is used
        self.cossin_w = jnp.asarray(win[:, None] * cossin, jnp.bfloat16)
        fb = mel_filterbank(N_MELS, N_FFT, SAMPLE_RATE)      # [N_MELS, N_FREQ]
        fb2 = np.zeros((DFT_WIDTH, MEL_PAD), dtype=np.float32)
        fb2[:N_FREQ, :N_MELS] = fb.T                         # applies to re^2 half
        fb2[DFT_PAD:DFT_PAD + N_FREQ, :N_MELS] = fb.T        # applies to im^2 half
        self.fb2 = jnp.asarray(fb2, jnp.bfloat16)

        # TODO(synk): stand-in tiny encoder-decoder instead of pretrained Whisper.
        self.tok_embed = (0.02 * jax.random.normal(k2, (VOCAB, D_MODEL))).astype(jnp.bfloat16)
        w_enc = jax.random.normal(k3, (N_MELS, D_MODEL)) / math.sqrt(N_MELS)
        w_enc_pad = jnp.zeros((MEL_PAD, D_MODEL), jnp.float32).at[:N_MELS].set(w_enc)
        # fold the Whisper (x + 4) / 4 normalization into the encoder projection:
        #   ((x + 4) * 0.25) @ W  ==  x @ (0.25 * W) + colsum(W)
        # (padded mel cols hit the zeroed rows >= N_MELS of W, so they stay inert)
        self.w_enc_scaled = (0.25 * w_enc_pad).astype(jnp.bfloat16)
        self.enc_bias = jnp.sum(w_enc_pad, axis=0, keepdims=True)    # [1, D] f32
        self.w_out = (jax.random.normal(k4, (D_MODEL, VOCAB)) / math.sqrt(D_MODEL)).astype(jnp.bfloat16)
        self.sot_ids = jnp.asarray(SOT_IDS, dtype=jnp.int32)

    # ---- forward: prepend attack, mel, logits ----
    def forward(self, audio_vector, decoder_input=None):
        B = audio_vector.shape[0]
        X = jnp.broadcast_to(self.audio_attack_segment[None, :], (B, self.attack_size))
        attacked_audio = jnp.concatenate([X, audio_vector], axis=1)
        logspec, gmax = self._audio_to_mel(attacked_audio)
        return self._mel_to_logit(logspec, gmax, decoder_input=decoder_input)

    def _audio_to_mel(self, audio):
        # Whisper log_mel_spectrogram(audio, n_mels, padding=N_SAMPLES); the
        # floor/scale normalization + pad_or_trim are fused into kernel 2.
        B = audio.shape[0]
        audio = jnp.pad(audio, ((0, 0), (0, N_SAMPLES)))                            # trailing zero pad
        audio = jnp.pad(audio, ((0, 0), (N_FFT // 2, N_FFT // 2)), mode="reflect")  # stft center pad
        L = audio.shape[1]
        assert L % HOP_LENGTH == 0, "padded audio length must be a multiple of HOP_LENGTH"
        # hop-chunk view: frame t == [chunk_t | chunk_{t+1}]; STFT framing happens
        # inside kernel 1, so no 2x-redundant framed-audio tensor is materialized.
        chunks = audio.reshape(B, L // HOP_LENGTH, HOP_LENGTH)
        logspec, rowmax = mel_frontend_pallas(chunks, self.cossin_w, self.fb2)
        gmax = jnp.max(rowmax).reshape(1)     # global max over full pre-trim spectrogram
        return logspec, gmax                  # logspec: [B, T, MEL_PAD] bf16

    def _mel_to_logit(self, mel3, gmax, decoder_input=None):
        B = mel3.shape[0]
        ids = jnp.broadcast_to(self.sot_ids[None, :], (B, self.sot_ids.shape[0]))
        if decoder_input is not None:
            ids = jnp.concatenate([ids, decoder_input.astype(jnp.int32)], axis=1)
        dec_emb = self.tok_embed[ids]                                            # [B, S, D] bf16
        return normalize_decode_pallas(gmax, mel3, dec_emb,
                                       self.w_enc_scaled, self.enc_bias, self.w_out)


if __name__ == "__main__":
    key = jax.random.PRNGKey(0)
    k_params, k_audio = jax.random.split(key)
    model = AudioAttackModelWrapperPallas(k_params)

    batch, audio_len = 2, 256
    audio = jax.random.normal(k_audio, (batch, audio_len), dtype=jnp.float32)

    fwd = jax.jit(lambda a: model.forward(a))
    logits = fwd(audio)
    jax.block_until_ready(logits)

    assert logits.shape == (batch, len(SOT_IDS), VOCAB), logits.shape
    assert logits.dtype == jnp.float32
    assert bool(jnp.all(jnp.isfinite(logits)))
    print("KERNEL_OK")
</pallas_src>

<mosaic_0001>
module attributes {stable_mosaic.version = 11 : i64} {
  func.func @_mel_frontend_kernel(%arg0: i32, %arg1: memref<1x82x32xf32, #tpu.memory_space<vmem>>, %arg2: memref<64x128xbf16, #tpu.memory_space<vmem>>, %arg3: memref<128x128xbf16, #tpu.memory_space<vmem>>, %arg4: memref<1x80x128xbf16, #tpu.memory_space<vmem>>, %arg5: memref<1x8x128xf32, #tpu.memory_space<vmem>>) attributes {dimension_semantics = [#tpu.dimension_semantics<parallel>], iteration_bounds = array<i64: 2>, scalar_prefetch = 0 : i64, scratch_operands = 0 : i64, tpu.core_type = #tpu.core_type<tc>, window_params = [{transform_indices = @transform_0, window_bounds = array<i64: 1, 82, 32>}, {pipeline_mode = #tpu.pipeline_mode<synchronous>, transform_indices = @transform_1, window_bounds = array<i64: 64, 128>}, {pipeline_mode = #tpu.pipeline_mode<synchronous>, transform_indices = @transform_2, window_bounds = array<i64: 128, 128>}, {transform_indices = @transform_3, window_bounds = array<i64: 1, 80, 128>}, {transform_indices = @transform_4, window_bounds = array<i64: 1, 8, 128>}]} {
    %c0 = arith.constant 0 : index
    %c0_0 = arith.constant 0 : index
    %c0_1 = arith.constant 0 : index
    %0 = vector.load %arg1[%c0, %c0_0, %c0_1] : memref<1x82x32xf32, #tpu.memory_space<vmem>>, vector<1x82x32xf32>
    %1 = vector.shape_cast %0 : vector<1x82x32xf32> to vector<82x32xf32>
    %2 = arith.truncf %1 : vector<82x32xf32> to vector<82x32xbf16>
    %c0_2 = arith.constant 0 : index
    %c0_3 = arith.constant 0 : index
    %3 = vector.load %arg2[%c0_2, %c0_3] : memref<64x128xbf16, #tpu.memory_space<vmem>>, vector<64x128xbf16>
    %4 = vector.extract_strided_slice %3 {offsets = [0, 0], sizes = [32, 128], strides = [1, 1]} : vector<64x128xbf16> to vector<32x128xbf16>
    %5 = vector.extract_strided_slice %3 {offsets = [32, 0], sizes = [32, 128], strides = [1, 1]} : vector<64x128xbf16> to vector<32x128xbf16>
    %6 = vector.extract_strided_slice %2 {offsets = [0, 0], sizes = [80, 32], strides = [1, 1]} : vector<82x32xbf16> to vector<80x32xbf16>
    %cst = arith.constant dense<0.000000e+00> : vector<80x128xf32>
    %7 = tpu.matmul %6, %4, %cst {dimension_numbers = #tpu.dot_dimension_numbers<[1], [0], [0], [1], [0, 0, 1, 1], [], []>} : vector<80x32xbf16>, vector<32x128xbf16>, vector<80x128xf32> -> vector<80x128xf32>
    %8 = vector.extract_strided_slice %2 {offsets = [1, 0], sizes = [80, 32], strides = [1, 1]} : vector<82x32xbf16> to vector<80x32xbf16>
    %cst_4 = arith.constant dense<0.000000e+00> : vector<80x128xf32>
    %9 = tpu.matmul %8, %5, %cst_4 {dimension_numbers = #tpu.dot_dimension_numbers<[1], [0], [0], [1], [0, 0, 1, 1], [], []>} : vector<80x32xbf16>, vector<32x128xbf16>, vector<80x128xf32> -> vector<80x128xf32>
    %10 = arith.addf %7, %9 : vector<80x128xf32>
    %11 = arith.mulf %10, %10 : vector<80x128xf32>
    %12 = arith.truncf %11 : vector<80x128xf32> to vector<80x128xbf16>
    %c0_5 = arith.constant 0 : index
    %c0_6 = arith.constant 0 : index
    %13 = vector.load %arg3[%c0_5, %c0_6] : memref<128x128xbf16, #tpu.memory_space<vmem>>, vector<128x128xbf16>
    %cst_7 = arith.constant dense<0.000000e+00> : vector<80x128xf32>
    %14 = tpu.matmul %12, %13, %cst_7 {dimension_numbers = #tpu.dot_dimension_numbers<[1], [0], [0], [1], [0, 0, 1, 1], [], []>} : vector<80x128xbf16>, vector<128x128xbf16>, vector<80x128xf32> -> vector<80x128xf32>
    %cst_8 = arith.constant 1.000000e-10 : f32
    %15 = vector.broadcast %cst_8 : f32 to vector<80x128xf32>
    %16 = arith.maximumf %14, %15 : vector<80x128xf32>
    %17 = math.log %16 : vector<80x128xf32>
    %cst_9 = arith.constant 0.434294492 : f32
    %18 = vector.broadcast %cst_9 : f32 to vector<80x128xf32>
    %19 = arith.mulf %17, %18 : vector<80x128xf32>
    %20 = arith.truncf %19 : vector<80x128xf32> to vector<80x128xbf16>
    %c0_10 = arith.constant 0 : index
    %c0_11 = arith.constant 0 : index
    %c0_12 = arith.constant 0 : index
    %21 = vector.load %arg4[%c0_10, %c0_11, %c0_12] : memref<1x80x128xbf16, #tpu.memory_space<vmem>>, vector<1x80x128xbf16>
    %22 = vector.shape_cast %21 : vector<1x80x128xbf16> to vector<80x128xbf16>
    %23 = vector.shape_cast %20 : vector<80x128xbf16> to vector<1x80x128xbf16>
    tpu.vector_store %arg4[%c0_10, %c0_11, %c0_12], %23 {strides = array<i32>} : memref<1x80x128xbf16, #tpu.memory_space<vmem>>, vector<1x80x128xbf16>,
    %cst_13 = arith.constant dense<0xFF800000> : vector<128xf32>
    %24 = vector.multi_reduction <maximumf>, %19, %cst_13 [0] : vector<80x128xf32> to vector<128xf32>
    %25 = vector.shape_cast %24 : vector<128xf32> to vector<1x128xf32>
    %26 = vector.shape_cast %25 : vector<1x128xf32> to vector<1x128xf32>
    %27 = vector.broadcast %26 : vector<1x128xf32> to vector<8x128xf32>
    %c0_14 = arith.constant 0 : index
    %c0_15 = arith.constant 0 : index
    %c0_16 = arith.constant 0 : index
    %28 = vector.load %arg5[%c0_14, %c0_15, %c0_16] : memref<1x8x128xf32, #tpu.memory_space<vmem>>, vector<1x8x128xf32>
    %29 = vector.shape_cast %28 : vector<1x8x128xf32> to vector<8x128xf32>
    %30 = vector.shape_cast %27 : vector<8x128xf32> to vector<1x8x128xf32>
    tpu.vector_store %arg5[%c0_14, %c0_15, %c0_16], %30 {strides = array<i32>} : memref<1x8x128xf32, #tpu.memory_space<vmem>>, vector<1x8x128xf32>,
    return
  }
  func.func @transform_0(%arg0: i32) -> (i32, i32, i32) {
    %c0_i32 = arith.constant 0 : i32
    %c0_i32_0 = arith.constant 0 : i32
    %c0_i32_1 = arith.constant 0 : i32
    return %arg0, %c0_i32, %c0_i32_0 : i32, i32, i32
  }
  func.func @transform_1(%arg0: i32) -> (i32, i32) {
    %c0_i32 = arith.constant 0 : i32
    %c0_i32_0 = arith.constant 0 : i32
    %c0_i32_1 = arith.constant 0 : i32
    return %c0_i32, %c0_i32_0 : i32, i32
  }
  func.func @transform_2(%arg0: i32) -> (i32, i32) {
    %c0_i32 = arith.constant 0 : i32
    %c0_i32_0 = arith.constant 0 : i32
    %c0_i32_1 = arith.constant 0 : i32
    return %c0_i32, %c0_i32_0 : i32, i32
  }
  func.func @transform_3(%arg0: i32) -> (i32, i32, i32) {
    %c0_i32 = arith.constant 0 : i32
    %c0_i32_0 = arith.constant 0 : i32
    %c0_i32_1 = arith.constant 0 : i32
    return %arg0, %c0_i32, %c0_i32_0 : i32, i32, i32
  }
  func.func @transform_4(%arg0: i32) -> (i32, i32, i32) {
    %c0_i32 = arith.constant 0 : i32
    %c0_i32_0 = arith.constant 0 : i32
    %c0_i32_1 = arith.constant 0 : i32
    return %arg0, %c0_i32, %c0_i32_0 : i32, i32, i32
  }
}

module attributes {stable_mosaic.version = 11 : i64} {
  func.func @_normalize_decode_kernel(%arg0: i32, %arg1: memref<1xf32, #tpu.memory_space<smem>>, %arg2: memref<2x64x128xbf16, #tpu.memory_space<vmem>>, %arg3: memref<2x4x32xbf16, #tpu.memory_space<vmem>>, %arg4: memref<128x32xbf16, #tpu.memory_space<vmem>>, %arg5: memref<1x32xf32, #tpu.memory_space<vmem>>, %arg6: memref<32x128xbf16, #tpu.memory_space<vmem>>, %arg7: memref<8x128xf32, #tpu.memory_space<vmem>>) attributes {dimension_semantics = [#tpu.dimension_semantics<parallel>], iteration_bounds = array<i64: 1>, scalar_prefetch = 0 : i64, scratch_operands = 0 : i64, tpu.core_type = #tpu.core_type<tc>, window_params = [{transform_indices = @transform_0, window_bounds = array<i64: 1>}, {transform_indices = @transform_1, window_bounds = array<i64: 2, 64, 128>}, {transform_indices = @transform_2, window_bounds = array<i64: 2, 4, 32>}, {pipeline_mode = #tpu.pipeline_mode<synchronous>, transform_indices = @transform_3, window_bounds = array<i64: 128, 32>}, {pipeline_mode = #tpu.pipeline_mode<synchronous>, transform_indices = @transform_4, window_bounds = array<i64: 1, 32>}, {pipeline_mode = #tpu.pipeline_mode<synchronous>, transform_indices = @transform_5, window_bounds = array<i64: 32, 128>}, {transform_indices = @transform_6, window_bounds = array<i64: 8, 128>}]} {
    %c0 = arith.constant 0 : index
    %0 = memref.load %arg1[%c0] : memref<1xf32, #tpu.memory_space<smem>>
    %cst = arith.constant 8.000000e+00 : f32
    %1 = arith.subf %0, %cst : f32
    %2 = arith.truncf %1 : f32 to bf16
    %c0_0 = arith.constant 0 : index
    %c0_1 = arith.constant 0 : index
    %c0_2 = arith.constant 0 : index
    %3 = vector.load %arg2[%c0_0, %c0_1, %c0_2] : memref<2x64x128xbf16, #tpu.memory_space<vmem>>, vector<2x64x128xbf16>
    %4 = vector.broadcast %2 : bf16 to vector<2x64x128xbf16>
    %5 = arith.maximumf %3, %4 : vector<2x64x128xbf16>
    %6 = vector.shape_cast %5 : vector<2x64x128xbf16> to vector<128x128xbf16>
    %c0_3 = arith.constant 0 : index
    %c0_4 = arith.constant 0 : index
    %7 = vector.load %arg4[%c0_3, %c0_4] : memref<128x32xbf16, #tpu.memory_space<vmem>>, vector<128x32xbf16>
    %cst_5 = arith.constant dense<0.000000e+00> : vector<128x32xf32>
    %8 = tpu.matmul %6, %7, %cst_5 {dimension_numbers = #tpu.dot_dimension_numbers<[1], [0], [0], [1], [0, 0, 1, 1], [], []>} : vector<128x128xbf16>, vector<128x32xbf16>, vector<128x32xf32> -> vector<128x32xf32>
    %c0_6 = arith.constant 0 : index
    %c0_7 = arith.constant 0 : index
    %9 = vector.load %arg5[%c0_6, %c0_7] : memref<1x32xf32, #tpu.memory_space<vmem>>, vector<1x32xf32>
    %10 = vector.broadcast %9 : vector<1x32xf32> to vector<128x32xf32>
    %11 = arith.addf %8, %10 : vector<128x32xf32>
    %12 = math.tanh %11 : vector<128x32xf32>
    %13 = arith.truncf %12 : vector<128x32xf32> to vector<128x32xbf16>
    %14 = vector.shape_cast %13 : vector<128x32xbf16> to vector<2x64x32xbf16>
    %c0_8 = arith.constant 0 : index
    %c0_9 = arith.constant 0 : index
    %c0_10 = arith.constant 0 : index
    %15 = vector.load %arg3[%c0_8, %c0_9, %c0_10] : memref<2x4x32xbf16, #tpu.memory_space<vmem>>, vector<2x4x32xbf16>
    %16 = arith.extf %15 : vector<2x4x32xbf16> to vector<2x4x32xf32>
    %cst_11 = arith.constant 0.176776692 : f32
    %17 = vector.broadcast %cst_11 : f32 to vector<2x4x32xf32>
    %18 = arith.mulf %16, %17 : vector<2x4x32xf32>
    %19 = arith.truncf %18 : vector<2x4x32xf32> to vector<2x4x32xbf16>
    "tpu.trace_start"() <{level = 10 : i32, message = "bsd,btd->bst"}> : () -> ()
    %cst_12 = arith.constant dense<0.000000e+00> : vector<2x4x64xf32>
    %20 = tpu.matmul %19, %14, %cst_12 {dimension_numbers = #tpu.dot_dimension_numbers<[2], [2], [1], [1], [0, 0, 0, 1, 1, 1], [0], [0]>} : vector<2x4x32xbf16>, vector<2x64x32xbf16>, vector<2x4x64xf32> -> vector<2x4x64xf32>
    "tpu.trace_stop"() : () -> ()
    %cst_13 = arith.constant dense<0xFF800000> : vector<2x4xf32>
    %21 = vector.multi_reduction <maximumf>, %20, %cst_13 [2] : vector<2x4x64xf32> to vector<2x4xf32>
    %22 = vector.shape_cast %21 : vector<2x4xf32> to vector<2x4x1xf32>
    %23 = vector.broadcast %22 : vector<2x4x1xf32> to vector<2x4x64xf32>
    %24 = arith.subf %20, %23 : vector<2x4x64xf32>
    %25 = math.exp %24 : vector<2x4x64xf32>
    %cst_14 = arith.constant dense<0.000000e+00> : vector<2x4xf32>
    %26 = vector.multi_reduction <add>, %25, %cst_14 [2] : vector<2x4x64xf32> to vector<2x4xf32>
    %27 = vector.shape_cast %26 : vector<2x4xf32> to vector<2x4x1xf32>
    %28 = vector.broadcast %27 : vector<2x4x1xf32> to vector<2x4x64xf32>
    %29 = arith.divf %25, %28 : vector<2x4x64xf32>
    %30 = arith.truncf %29 : vector<2x4x64xf32> to vector<2x4x64xbf16>
    "tpu.trace_start"() <{level = 10 : i32, message = "bst,btd->bsd"}> : () -> ()
    %cst_15 = arith.constant dense<0.000000e+00> : vector<2x4x32xf32>
    %31 = tpu.matmul %30, %14, %cst_15 {dimension_numbers = #tpu.dot_dimension_numbers<[2], [1], [1], [2], [0, 0, 0, 1, 1, 2], [0], [0]>} : vector<2x4x64xbf16>, vector<2x64x32xbf16>, vector<2x4x32xf32> -> vector<2x4x32xf32>
    "tpu.trace_stop"() : () -> ()
    %32 = arith.addf %16, %31 : vector<2x4x32xf32>
    %33 = arith.truncf %32 : vector<2x4x32xf32> to vector<2x4x32xbf16>
    %34 = vector.shape_cast %33 : vector<2x4x32xbf16> to vector<8x32xbf16>
    %c0_16 = arith.constant 0 : index
    %c0_17 = arith.constant 0 : index
    %35 = vector.load %arg6[%c0_16, %c0_17] : memref<32x128xbf16, #tpu.memory_space<vmem>>, vector<32x128xbf16>
    %cst_18 = arith.constant dense<0.000000e+00> : vector<8x128xf32>
    %36 = tpu.matmul %34, %35, %cst_18 {dimension_numbers = #tpu.dot_dimension_numbers<[1], [0], [0], [1], [0, 0, 1, 1], [], []>} : vector<8x32xbf16>, vector<32x128xbf16>, vector<8x128xf32> -> vector<8x128xf32>
    %c0_19 = arith.constant 0 : index
    %c0_20 = arith.constant 0 : index
    %37 = vector.load %arg7[%c0_19, %c0_20] : memref<8x128xf32, #tpu.memory_space<vmem>>, vector<8x128xf32>
    tpu.vector_store %arg7[%c0_19, %c0_20], %36 {strides = array<i32>} : memref<8x128xf32, #tpu.memory_space<vmem>>, vector<8x128xf32>,
    return
  }
  func.func @transform_0(%arg0: i32) -> i32 {
    %c0_i32 = arith.constant 0 : i32
    %c0_i32_0 = arith.constant 0 : i32
    return %c0_i32 : i32
  }
  func.func @transform_1(%arg0: i32) -> (i32, i32, i32) {
    %c0_i32 = arith.constant 0 : i32
    %c0_i32_0 = arith.constant 0 : i32
    %c0_i32_1 = arith.constant 0 : i32
    return %arg0, %c0_i32, %c0_i32_0 : i32, i32, i32
  }
  func.func @transform_2(%arg0: i32) -> (i32, i32, i32) {
    %c0_i32 = arith.constant 0 : i32
    %c0_i32_0 = arith.constant 0 : i32
    %c0_i32_1 = arith.constant 0 : i32
    return %arg0, %c0_i32, %c0_i32_0 : i32, i32, i32
  }
  func.func @transform_3(%arg0: i32) -> (i32, i32) {
    %c0_i32 = arith.constant 0 : i32
    %c0_i32_0 = arith.constant 0 : i32
    %c0_i32_1 = arith.constant 0 : i32
    return %c0_i32, %c0_i32_0 : i32, i32
  }
  func.func @transform_4(%arg0: i32) -> (i32, i32) {
    %c0_i32 = arith.constant 0 : i32
    %c0_i32_0 = arith.constant 0 : i32
    %c0_i32_1 = arith.constant 0 : i32
    return %c0_i32, %c0_i32_0 : i32, i32
  }
  func.func @transform_5(%arg0: i32) -> (i32, i32) {
    %c0_i32 = arith.constant 0 : i32
    %c0_i32_0 = arith.constant 0 : i32
    %c0_i32_1 = arith.constant 0 : i32
    return %c0_i32, %c0_i32_0 : i32, i32
  }
  func.func @transform_6(%arg0: i32) -> (i32, i32) {
    %c0_i32 = arith.constant 0 : i32
    %c0_i32_0 = arith.constant 0 : i32
    return %arg0, %c0_i32 : i32, i32
  }
}

</mosaic_0001>

<llo_original>
// kernel: _lambda_.2
$region0: #{_lambda_.2}
  #allocation0 [shape = 'u32[]', space=smem, size = 0x4, offset = 0x4, fixed_abs, tag = 'smem constant byte address 0x4 - core index']
  #allocation1 [shape = 'u32[144,128]{1,0:T(1,128)}', space=vmem, size = 0x12000, scoped, tag = 'internal scratch']
  %s0 = inlined_call_operand.vmem [shape: f32[2,82,32], index: 0, kind: input, shape index: {}]
  %s1 = inlined_call_operand.vmem [shape: bf16[64,128], index: 1, kind: input, shape index: {}]
  %s2 = inlined_call_operand.vmem [shape: bf16[128,128], index: 2, kind: input, shape index: {}]
  %s3 = inlined_call_operand.vmem [shape: bf16[2,80,128], index: 3, kind: output, shape index: {0}]
  %s4 = inlined_call_operand.vmem [shape: f32[2,8,128], index: 4, kind: output, shape index: {1}]
  %5 = xla_tuple %s3, %s4
  %s6 = sld [smem:[#allocation0]]
  $region53: #{_lambda_.2} parent=0
    _
  %s8 = ssub.s32 1, %s6
  %s9 = scalar_select 0, %s8, %s6
  loop: start=0, step=1, limit=4
  $region2: #{_lambda_.2} parent=0 // loop_pre_header
    _
  $region3: #{_lambda_.2} parent=0 // loop_header
    %s11 = sphi 0, %s15
    %p12 = scmp.ge.s32.totalorder %s11, 4
    %s21 = sphi 0, %s23
    %s24 = sphi 0, %s21
    %s25 = sphi 0, %s24
    %s41 = sphi 0, %s25
    %s45 = sphi 0, %s45
    %s47 = sphi 0, %s45
    %s48 = sphi 0, %s47
    %s62 = sphi 0, %s48
    %s66 = sphi 0, %s66
    %s68 = sphi 0, %s66
    %s69 = sphi 0, %s68
    %s83 = sphi 0, %s69
    %s89 = sphi 0, %s91
    %s92 = sphi 0, %s89
    %s93 = sphi 0, %s92
    %s109 = sphi 0, %s93
    %s115 = sphi 0, %s117
    %s118 = sphi 0, %s115
    %s119 = sphi 0, %s118
    %s135 = sphi 0, %s119
  $region4: #{_lambda_.2} parent=0 // loop_header_branch
    %14 = sbr.rel (%p12) target = $region8
  $region5: #{_lambda_.2} parent=0 // loop_body
    %s16 = ssub.s32 %s11, 1
    %s17 = ssub.s32 %s11, 2
    %s18 = sadd.s32 %s11, 1
    %s19 = ssub.s32 %s11, %s18
    %p20 = scmp.eq.s32.totalorder %s19, 0
    %s22 = sadd.s32 %s21, 1
    %s23 = scalar_select %p20, %s21, %s22
    %p26 = pneg %p20
    %p27 = scmp.eq.s32.totalorder %s11, 1
    %p28 = por %p26, %p27
    %p29 = scmp.ne.s32.totalorder %s21, %s24
    %p30 = scmp.eq.s32.totalorder %s11, 0
    %p31 = por %p29, %p30
    %p32 = scmp.ne.s32.totalorder %s21, %s24
    %p33 = scmp.eq.s32.totalorder %s16, 1
    %p34 = por %p32, %p33
    %p35 = scmp.ne.s32.totalorder %s24, %s25
    %p36 = scmp.eq.s32.totalorder %s16, 0
    %p37 = por %p35, %p36
    %p38 = scmp.ne.s32.totalorder %s24, %s25
    %p39 = scmp.eq.s32.totalorder %s17, 1
    %p40 = por %p38, %p39
    %p42 = scmp.ne.s32.totalorder %s25, %s41
    %p43 = scmp.eq.s32.totalorder %s17, 0
    %p44 = por %p42, %p43
    %s46 = sadd.s32 %s45, 1
    %p49 = scmp.eq.s32.totalorder %s11, 1
    %p50 = scmp.ne.s32.totalorder %s45, %s47
    %p51 = scmp.eq.s32.totalorder %s11, 0
    %p52 = por %p50, %p51
    %p53 = scmp.ne.s32.totalorder %s45, %s47
    %p54 = scmp.eq.s32.totalorder %s16, 1
    %p55 = por %p53, %p54
    %p56 = scmp.ne.s32.totalorder %s47, %s48
    %p57 = scmp.eq.s32.totalorder %s16, 0
    %p58 = por %p56, %p57
    %p59 = scmp.ne.s32.totalorder %s47, %s48
    %p60 = scmp.eq.s32.totalorder %s17, 1
    %p61 = por %p59, %p60
    %p63 = scmp.ne.s32.totalorder %s48, %s62
    %p64 = scmp.eq.s32.totalorder %s17, 0
    %p65 = por %p63, %p64
    %s67 = sadd.s32 %s66, 1
    %p70 = scmp.eq.s32.totalorder %s11, 1
    %p71 = scmp.ne.s32.totalorder %s66, %s68
    %p72 = scmp.eq.s32.totalorder %s11, 0
    %p73 = por %p71, %p72
    %p74 = scmp.ne.s32.totalorder %s66, %s68
    %p75 = scmp.eq.s32.totalorder %s16, 1
    %p76 = por %p74, %p75
    %p77 = scmp.ne.s32.totalorder %s68, %s69
    %p78 = scmp.eq.s32.totalorder %s16, 0
    %p79 = por %p77, %p78
    %p80 = scmp.ne.s32.totalorder %s68, %s69
    %p81 = scmp.eq.s32.totalorder %s17, 1
    %p82 = por %p80, %p81
    %p84 = scmp.ne.s32.totalorder %s69, %s83
    %p85 = scmp.eq.s32.totalorder %s17, 0
    %p86 = por %p84, %p85
    %s87 = ssub.s32 %s11, %s18
    %p88 = scmp.eq.s32.totalorder %s87, 0
    %s90 = sadd.s32 %s89, 1
    %s91 = scalar_select %p88, %s89, %s90
    %p94 = pneg %p88
    %p95 = scmp.eq.s32.totalorder %s11, 1
    %p96 = por %p94, %p95
    %p97 = scmp.ne.s32.totalorder %s89, %s92
    %p98 = scmp.eq.s32.totalorder %s11, 0
    %p99 = por %p97, %p98
    %p100 = scmp.ne.s32.totalorder %s89, %s92
    %p101 = scmp.eq.s32.totalorder %s16, 1
    %p102 = por %p100, %p101
    %p103 = scmp.ne.s32.totalorder %s92, %s93
    %p104 = scmp.eq.s32.totalorder %s16, 0
    %p105 = por %p103, %p104
    %p106 = scmp.ne.s32.totalorder %s92, %s93
    %p107 = scmp.eq.s32.totalorder %s17, 1
    %p108 = por %p106, %p107
    %p110 = scmp.ne.s32.totalorder %s93, %s109
    %p111 = scmp.eq.s32.totalorder %s17, 0
    %p112 = por %p110, %p111
    %s113 = ssub.s32 %s11, %s18
    %p114 = scmp.eq.s32.totalorder %s113, 0
    %s116 = sadd.s32 %s115, 1
    %s117 = scalar_select %p114, %s115, %s116
    %p120 = pneg %p114
    %p121 = scmp.eq.s32.totalorder %s11, 1
    %p122 = por %p120, %p121
    %p123 = scmp.ne.s32.totalorder %s115, %s118
    %p124 = scmp.eq.s32.totalorder %s11, 0
    %p125 = por %p123, %p124
    %p126 = scmp.ne.s32.totalorder %s115, %s118
    %p127 = scmp.eq.s32.totalorder %s16, 1
    %p128 = por %p126, %p127
    %p129 = scmp.ne.s32.totalorder %s118, %s119
    %p130 = scmp.eq.s32.totalorder %s16, 0
    %p131 = por %p129, %p130
    %p132 = scmp.ne.s32.totalorder %s118, %s119
    %p133 = scmp.eq.s32.totalorder %s17, 1
    %p134 = por %p132, %p133
    %p136 = scmp.ne.s32.totalorder %s119, %s135
    %p137 = scmp.eq.s32.totalorder %s17, 0
    %p138 = por %p136, %p137
    %p139 = scmp.le.s32.totalorder 1, %s11
    %p140 = scmp.lt.s32.totalorder %s11, 3
    %p141 = pnand %p139, %p140
    %p142 = pneg %p141
    // Predicated region
    $region9: #{_lambda_.2} parent=5 // pred_check
      _
    $region10: #{_lambda_.2} parent=5 // pred_check_branch
      %144 = sbr.rel (%p141) target = $region12
    $region11: #{_lambda_.2} parent=5 // pred_region
      %s145 = ssub.s32 %s11, 1
      // Predicated region
      $region13: #{_lambda_.2} parent=11 // pred_check
        %p146 = pneg %p58
      $region14: #{_lambda_.2} parent=11 // pred_check_branch
        %148 = sbr.rel (%p146) target = $region16
      $region15: #{_lambda_.2} parent=11 // pred_region
        _
      $region16: #{_lambda_.2} parent=11 // pred_fallthru
        _
      // Predicated region
      $region17: #{_lambda_.2} parent=11 // pred_check
        %p149 = pneg %p79
      $region18: #{_lambda_.2} parent=11 // pred_check_branch
        %151 = sbr.rel (%p149) target = $region20
      $region19: #{_lambda_.2} parent=11 // pred_region
        _
      $region20: #{_lambda_.2} parent=11 // pred_fallthru
        _
    $region12: #{_lambda_.2} parent=5 // pred_fallthru
      _
    %p152 = scmp.lt.s32.totalorder %s11, 2
    // Predicated region
    $region21: #{_lambda_.2} parent=5 // pred_check
      %p153 = pneg %p152
    $region22: #{_lambda_.2} parent=5 // pred_check_branch
      %155 = sbr.rel (%p153) target = $region24
    $region23: #{_lambda_.2} parent=5 // pred_region
      // Predicated region
      $region25: #{_lambda_.2} parent=23 // pred_check
        %p156 = pneg %p31
      $region26: #{_lambda_.2} parent=23 // pred_check_branch
        %158 = sbr.rel (%p156) target = $region28
      $region27: #{_lambda_.2} parent=23 // pred_region
        %p159 = scmp.lt.s32.totalorder %s11, 1
        %s160 = scalar_select %p159, %s11, 1
        %s161 = smul.addr %s160, 11
        %s162 = smul.addr %s161, 8
        %s163 = scalar_lea.vmem %s0, %s162
      $region28: #{_lambda_.2} parent=23 // pred_fallthru
        _
    $region24: #{_lambda_.2} parent=5 // pred_fallthru
      _
    %p164 = scmp.le.s32.totalorder 1, %s11
    %p165 = scmp.lt.s32.totalorder %s11, 3
    %p166 = pnand %p164, %p165
    %p167 = pneg %p166
    // Predicated region
    $region29: #{_lambda_.2} parent=5 // pred_check
      _
    $region30: #{_lambda_.2} parent=5 // pred_check_branch
      %169 = sbr.rel (%p166) target = $region32
    $region31: #{_lambda_.2} parent=5 // pred_region
      %s170 = ssub.s32 %s11, 1
      %p171 = scmp.lt.s32.totalorder %s16, 1
      %s172 = scalar_select %p171, %s16, 1
      %s173 = smul.addr %s172, 11
      %s174 = smul.addr %s173, 8
      %s175 = scalar_lea.vmem %s0, %s174
      %p176 = pneg %p37
      %p177 = pneg %p34
      %p178 = pneg %p58
      %p179 = pneg %p55
      %p180 = pneg %p79
      %p181 = pneg %p76
      %p182 = pneg %p105
      %p183 = pneg %p102
      %p184 = scmp.lt.s32.totalorder %s16, 1
      %s185 = scalar_select %p184, %s16, 1
      %s186 = smul.addr %s185, 10
      %s187 = smul.addr %s186, 4
      %s188 = scalar_lea.vmem %s3, %s187
      %p189 = pneg %p131
      %p190 = pneg %p128
      %p191 = scmp.lt.s32.totalorder %s16, 1
      %s192 = scalar_select %p191, %s16, 1
      %s193 = smul.addr %s192, 8
      %s194 = scalar_lea.vmem %s4, %s193
      %p195 = scmp.lt.s32.totalorder %s16, 1
      %s196 = scalar_select %p195, %s16, 1
      %s197 = smul.addr %s196, 11
      %s198 = smul.addr %s197, 8
      %s199 = scalar_lea.vmem %s0, %s198
      %p200 = scmp.lt.s32.totalorder %s16, 1
      %s201 = scalar_select %p200, %s16, 1
      %s202 = smul.addr %s201, 10
      %s203 = smul.addr %s202, 4
      %s204 = scalar_lea.vmem %s3, %s203
      %p205 = scmp.lt.s32.totalorder %s16, 1
      %s206 = scalar_select %p205, %s16, 1
      %s207 = smul.addr %s206, 8
      %s208 = scalar_lea.vmem %s4, %s207
      %v210 = vld [vmem:[%s199] sm:$0xff]
      %v211 = vld [vmem:[%s199 + $0x8] sm:$0xff]
      %v212 = vld [vmem:[%s199 + $0x10] sm:$0xff]
      %v213 = vld [vmem:[%s199 + $0x18] sm:$0xff]
      %v214 = vld [vmem:[%s199 + $0x20] sm:$0xff]
      %v215 = vld [vmem:[%s199 + $0x28] sm:$0xff]
      %v216 = vld [vmem:[%s199 + $0x30] sm:$0xff]
      %v217 = vld [vmem:[%s199 + $0x38] sm:$0xff]
      %v218 = vld [vmem:[%s199 + $0x40] sm:$0xff]
      %v219 = vld [vmem:[%s199 + $0x48] sm:$0xff]
      %v220 = vld [vmem:[%s199 + $0x50] sm:$0x3]
      %v221 = vpack.c.bf16 %v211, %v210
      %v222 = vpack.c.bf16 %v213, %v212
      %v223 = vpack.c.bf16 %v215, %v214
      %v224 = vpack.c.bf16 %v217, %v216
      %v225 = vpack.c.bf16 %v219, %v218
      %v226 = vpack.c.bf16 %v220, %v220
      %v227 = vld [vmem:[%s1] sm:$0xf]
      %v228 = vld [vmem:[%s1 + $0x4] sm:$0xf]
      %v229 = vld [vmem:[%s1 + $0x8] sm:$0xf]
      %v230 = vld [vmem:[%s1 + $0xc] sm:$0xf]
      %v231 = vld [vmem:[%s1 + $0x10] sm:$0xf]
      %v232 = vld [vmem:[%s1 + $0x14] sm:$0xf]
      %v233 = vld [vmem:[%s1 + $0x18] sm:$0xf]
      %v234 = vld [vmem:[%s1 + $0x1c] sm:$0xf]
      %vm235 = vsmask.f32 7424
      %v237 = vshrl.u32 %v221, 16
      %v239 = vshll.u32 %v221, 16
      %v241 = vrot.slane %v239, 1
      %v242 = vor.u32 %v237, %v241
      %v244 = vshll.u32 %v222, 16
      %v246 = vrot.slane %v244, 1
      %v247 = vsel %vm235, %v242, %v246
      %v248 = vshrl.u32 %v222, 16
      %v250 = vor.u32 %v248, %v246
      %v252 = vshll.u32 %v223, 16
      %v254 = vrot.slane %v252, 1
      %v255 = vsel %vm235, %v250, %v254
      %v256 = vshrl.u32 %v223, 16
      %v258 = vor.u32 %v256, %v254
      %v260 = vshll.u32 %v224, 16
      %v262 = vrot.slane %v260, 1
      %v263 = vsel %vm235, %v258, %v262
      %v264 = vshrl.u32 %v224, 16
      %v266 = vor.u32 %v264, %v262
      %v268 = vshll.u32 %v225, 16
      %v270 = vrot.slane %v268, 1
      %v271 = vsel %vm235, %v266, %v270
      %v272 = vshrl.u32 %v225, 16
      %v274 = vor.u32 %v272, %v270
      %v276 = vshll.u32 %v226, 16
      %v278 = vrot.slane %v276, 1
      %v279 = vsel %vm235, %v274, %v278
      %v284 = vunpack.c.l.b16 %v231
      %v285 = vunpack.c.l.b16 %v232
      %v286 = vunpack.c.l.b16 %v233
      %v287 = vunpack.c.l.b16 %v234
      %v288 = vpack.c.b16 %v285, %v284
      %v289 = vpack.c.b16 %v287, %v286
      %vm292 = vcmask 261120
      %v294 = vsel %vm292, %v247, 0
      %v297 = vsel %vm292, %v255, 0
      %v300 = vsel %vm292, %v263, 0
      %v303 = vsel %vm292, %v271, 0
      %v306 = vsel %vm292, %v279, 0
      %308 = vmatprep.subr.bf16.mxu0 0
      %309 = vmatpush1.bf16.msra.mxu0 0
      %310 = vmatprep.subr.bf16.mxu0 0
      %311 = vmatpush1.bf16.msra.mxu0 0
      %312 = vmatprep.subr.bf16.mxu0 0
      %313 = vmatpush1.bf16.msra.mxu0 0
      %314 = vmatprep.subr.bf16.mxu0 0
      %315 = vmatpush1.bf16.msra.mxu0 0
      %316 = vmatprep.subr.bf16.mxu0 0
      %317 = vmatpush1.bf16.msra.mxu0 0
      %318 = vmatprep.subr.bf16.mxu0 0
      %319 = vmatpush1.bf16.msra.mxu0 0
      %320 = vmatprep.subr.bf16.mxu0 0
      %321 = vmatpush1.bf16.msra.mxu0 %v289
      %322 = vmatprep.subr.bf16.mxu0 0
      %323 = vmatpush1.bf16.msra.mxu0 %v288
      %324 = vmatprep.subr.bf16.mxu0 0
      %325 = vmatpush2.bf16.msra.mxu0 0
      %326 = vmatprep.subr.bf16.mxu0 0
      %327 = vmatpush2.bf16.msra.mxu0 0
      %328 = vmatprep.subr.bf16.mxu0 0
      %329 = vmatpush2.bf16.msra.mxu0 0
      %330 = vmatprep.subr.bf16.mxu0 0
      %331 = vmatpush2.bf16.msra.mxu0 0
      %332 = vmatprep.subr.bf16.mxu0 0
      %333 = vmatpush2.bf16.msra.mxu0 0
      %334 = vmatprep.subr.bf16.mxu0 0
      %335 = vmatpush2.bf16.msra.mxu0 0
      %336 = vmatprep.subr.bf16.mxu0 0
      %337 = vmatpush2.bf16.msra.mxu0 0
      %338 = vmatprep.subr.bf16.mxu0 0
      %339 = vmatpush2.bf16.msra.mxu0 0
      %340 = vmatprep.mubr.bf16.mxu0 0
      %341 = vmatmul.mubr.bf16.gmra.mxu0 %v294
      %v342 = vpop.f32.mrf.mxu0
      %v343 = vadd.f32 0.0, %v342
      %v344 = vpop.f32.mrf.mxu0
      %v345 = vpop.f32.mrf.mxu0
      %v346 = vadd.f32 0.0, %v345
      %v347 = vpop.f32.mrf.mxu0
      %348 = vmatprep.mubr.bf16.mxu0 0
      %349 = vmatmul.mubr.bf16.gmra.mxu0 %v297
      %v350 = vpop.f32.mrf.mxu0
      %v351 = vadd.f32 0.0, %v350
      %v352 = vpop.f32.mrf.mxu0
      %v353 = vpop.f32.mrf.mxu0
      %v354 = vadd.f32 0.0, %v353
      %v355 = vpop.f32.mrf.mxu0
      %356 = vmatprep.mubr.bf16.mxu0 0
      %357 = vmatmul.mubr.bf16.gmra.mxu0 %v300
      %v358 = vpop.f32.mrf.mxu0
      %v359 = vadd.f32 0.0, %v358
      %v360 = vpop.f32.mrf.mxu0
      %v361 = vpop.f32.mrf.mxu0
      %v362 = vadd.f32 0.0, %v361
      %v363 = vpop.f32.mrf.mxu0
      %364 = vmatprep.mubr.bf16.mxu0 0
      %365 = vmatmul.mubr.bf16.gmra.mxu0 %v303
      %v366 = vpop.f32.mrf.mxu0
      %v367 = vadd.f32 0.0, %v366
      %v368 = vpop.f32.mrf.mxu0
      %v369 = vpop.f32.mrf.mxu0
      %v370 = vadd.f32 0.0, %v369
      %v371 = vpop.f32.mrf.mxu0
      %372 = vmatprep.mubr.bf16.mxu0 0
      %373 = vmatmul.mubr.bf16.gmra.mxu0 %v306
      %v374 = vpop.f32.mrf.mxu0
      %v375 = vadd.f32 0.0, %v374
      %v376 = vpop.f32.mrf.mxu0
      %v377 = vpop.f32.mrf.mxu0
      %v378 = vadd.f32 0.0, %v377
      %v379 = vpop.f32.mrf.mxu0
      %380 = vdwg.mxu0
      %v385 = vunpack.c.l.b16 %v227
      %v386 = vunpack.c.l.b16 %v228
      %v387 = vunpack.c.l.b16 %v229
      %v388 = vunpack.c.l.b16 %v230
      %v389 = vpack.c.b16 %v386, %v385
      %v390 = vpack.c.b16 %v388, %v387
      %v393 = vsel %vm292, %v221, 0
      %v395 = vsel %vm292, %v222, 0
      %v397 = vsel %vm292, %v223, 0
      %v399 = vsel %vm292, %v224, 0
      %v401 = vsel %vm292, %v225, 0
      %403 = vmatprep.subr.bf16.mxu0 0
      %404 = vmatpush1.bf16.msra.mxu0 0
      %405 = vmatprep.subr.bf16.mxu0 0
      %406 = vmatpush1.bf16.msra.mxu0 0
      %407 = vmatprep.subr.bf16.mxu0 0
      %408 = vmatpush1.bf16.msra.mxu0 0
      %409 = vmatprep.subr.bf16.mxu0 0
      %410 = vmatpush1.bf16.msra.mxu0 0
      %411 = vmatprep.subr.bf16.mxu0 0
      %412 = vmatpush1.bf16.msra.mxu0 0
      %413 = vmatprep.subr.bf16.mxu0 0
      %414 = vmatpush1.bf16.msra.mxu0 0
      %415 = vmatprep.subr.bf16.mxu0 0
      %416 = vmatpush1.bf16.msra.mxu0 %v390
      %417 = vmatprep.subr.bf16.mxu0 0
      %418 = vmatpush1.bf16.msra.mxu0 %v389
      %419 = vmatprep.subr.bf16.mxu0 0
      %420 = vmatpush2.bf16.msra.mxu0 0
      %421 = vmatprep.subr.bf16.mxu0 0
      %422 = vmatpush2.bf16.msra.mxu0 0
      %423 = vmatprep.subr.bf16.mxu0 0
      %424 = vmatpush2.bf16.msra.mxu0 0
      %425 = vmatprep.subr.bf16.mxu0 0
      %426 = vmatpush2.bf16.msra.mxu0 0
      %427 = vmatprep.subr.bf16.mxu0 0
      %428 = vmatpush2.bf16.msra.mxu0 0
      %429 = vmatprep.subr.bf16.mxu0 0
      %430 = vmatpush2.bf16.msra.mxu0 0
      %431 = vmatprep.subr.bf16.mxu0 0
      %432 = vmatpush2.bf16.msra.mxu0 0
      %433 = vmatprep.subr.bf16.mxu0 0
      %434 = vmatpush2.bf16.msra.mxu0 0
      %435 = vmatprep.mubr.bf16.mxu0 0
      %436 = vmatmul.mubr.bf16.gmra.mxu0 %v393
      %v437 = vpop.f32.mrf.mxu0
      %v438 = vadd.f32 %v343, %v437
      %v439 = vpop.f32.mrf.mxu0
      %v440 = vpop.f32.mrf.mxu0
      %v441 = vadd.f32 %v346, %v440
      %v442 = vpop.f32.mrf.mxu0
      %443 = vmatprep.mubr.bf16.mxu0 0
      %444 = vmatmul.mubr.bf16.gmra.mxu0 %v395
      %v445 = vpop.f32.mrf.mxu0
      %v446 = vadd.f32 %v351, %v445
      %v447 = vpop.f32.mrf.mxu0
      %v448 = vpop.f32.mrf.mxu0
      %v449 = vadd.f32 %v354, %v448
      %v450 = vpop.f32.mrf.mxu0
      %451 = vmatprep.mubr.bf16.mxu0 0
      %452 = vmatmul.mubr.bf16.gmra.mxu0 %v397
      %v453 = vpop.f32.mrf.mxu0
      %v454 = vadd.f32 %v359, %v453
      %v455 = vpop.f32.mrf.mxu0
      %v456 = vpop.f32.mrf.mxu0
      %v457 = vadd.f32 %v362, %v456
      %v458 = vpop.f32.mrf.mxu0
      %459 = vmatprep.mubr.bf16.mxu0 0
      %460 = vmatmul.mubr.bf16.gmra.mxu0 %v399
      %v461 = vpop.f32.mrf.mxu0
      %v462 = vadd.f32 %v367, %v461
      %v463 = vpop.f32.mrf.mxu0
      %v464 = vpop.f32.mrf.mxu0
      %v465 = vadd.f32 %v370, %v464
      %v466 = vpop.f32.mrf.mxu0
      %467 = vmatprep.mubr.bf16.mxu0 0
      %468 = vmatmul.mubr.bf16.gmra.mxu0 %v401
      %v469 = vpop.f32.mrf.mxu0
      %v470 = vadd.f32 %v375, %v469
      %v471 = vpop.f32.mrf.mxu0
      %v472 = vpop.f32.mrf.mxu0
      %v473 = vadd.f32 %v378, %v472
      %v474 = vpop.f32.mrf.mxu0
      %475 = vdwg.mxu0
      %v476 = vmul.f32 %v438, %v438
      %v477 = vmul.f32 %v441, %v441
      %v478 = vmul.f32 %v446, %v446
      %v479 = vmul.f32 %v449, %v449
      %v480 = vmul.f32 %v454, %v454
      %v481 = vmul.f32 %v457, %v457
      %v482 = vmul.f32 %v462, %v462
      %v483 = vmul.f32 %v465, %v465
      %v484 = vmul.f32 %v470, %v470
      %v485 = vmul.f32 %v473, %v473
      %v486 = vpack.c.bf16 %v477, %v476
      %v487 = vpack.c.bf16 %v479, %v478
      %v488 = vpack.c.bf16 %v481, %v480
      %v489 = vpack.c.bf16 %v483, %v482
      %v490 = vpack.c.bf16 %v485, %v484
      %v491 = vld [vmem:[%s2] sm:$0xf]
      %v492 = vld [vmem:[%s2 + $0x4] sm:$0xf]
      %v493 = vld [vmem:[%s2 + $0x8] sm:$0xf]
      %v494 = vld [vmem:[%s2 + $0xc] sm:$0xf]
      %v495 = vld [vmem:[%s2 + $0x10] sm:$0xf]
      %v496 = vld [vmem:[%s2 + $0x14] sm:$0xf]
      %v497 = vld [vmem:[%s2 + $0x18] sm:$0xf]
      %v498 = vld [vmem:[%s2 + $0x1c] sm:$0xf]
      %v499 = vld [vmem:[%s2 + $0x20] sm:$0xf]
      %v500 = vld [vmem:[%s2 + $0x24] sm:$0xf]
      %v501 = vld [vmem:[%s2 + $0x28] sm:$0xf]
      %v502 = vld [vmem:[%s2 + $0x2c] sm:$0xf]
      %v503 = vld [vmem:[%s2 + $0x30] sm:$0xf]
      %v504 = vld [vmem:[%s2 + $0x34] sm:$0xf]
      %v505 = vld [vmem:[%s2 + $0x38] sm:$0xf]
      %v506 = vld [vmem:[%s2 + $0x3c] sm:$0xf]
      %v523 = vunpack.c.l.b16 %v491
      %v524 = vunpack.c.l.b16 %v492
      %v525 = vunpack.c.l.b16 %v493
      %v526 = vunpack.c.l.b16 %v494
      %v527 = vunpack.c.l.b16 %v495
      %v528 = vunpack.c.l.b16 %v496
      %v529 = vunpack.c.l.b16 %v497
      %v530 = vunpack.c.l.b16 %v498
      %v531 = vunpack.c.l.b16 %v499
      %v532 = vunpack.c.l.b16 %v500
      %v533 = vunpack.c.l.b16 %v501
      %v534 = vunpack.c.l.b16 %v502
      %v535 = vunpack.c.l.b16 %v503
      %v536 = vunpack.c.l.b16 %v504
      %v537 = vunpack.c.l.b16 %v505
      %v538 = vunpack.c.l.b16 %v506
      %v539 = vpack.c.b16 %v524, %v523
      %v540 = vpack.c.b16 %v526, %v525
      %v541 = vpack.c.b16 %v528, %v527
      %v542 = vpack.c.b16 %v530, %v529
      %v543 = vpack.c.b16 %v532, %v531
      %v544 = vpack.c.b16 %v534, %v533
      %v545 = vpack.c.b16 %v536, %v535
      %v546 = vpack.c.b16 %v538, %v537
      %555 = vmatprep.subr.bf16.mxu0 0
      %556 = vmatpush1.bf16.msra.mxu0 %v546
      %557 = vmatprep.subr.bf16.mxu0 0
      %558 = vmatpush1.bf16.msra.mxu0 %v545
      %559 = vmatprep.subr.bf16.mxu0 0
      %560 = vmatpush1.bf16.msra.mxu0 %v544
      %561 = vmatprep.subr.bf16.mxu0 0
      %562 = vmatpush1.bf16.msra.mxu0 %v543
      %563 = vmatprep.subr.bf16.mxu0 0
      %564 = vmatpush1.bf16.msra.mxu0 %v542
      %565 = vmatprep.subr.bf16.mxu0 0
      %566 = vmatpush1.bf16.msra.mxu0 %v541
      %567 = vmatprep.subr.bf16.mxu0 0
      %568 = vmatpush1.bf16.msra.mxu0 %v540
      %569 = vmatprep.subr.bf16.mxu0 0
      %570 = vmatpush1.bf16.msra.mxu0 %v539
      %571 = vmatprep.subr.bf16.mxu0 0
      %572 = vmatpush2.bf16.msra.mxu0 0
      %573 = vmatprep.subr.bf16.mxu0 0
      %574 = vmatpush2.bf16.msra.mxu0 0
      %575 = vmatprep.subr.bf16.mxu0 0
      %576 = vmatpush2.bf16.msra.mxu0 0
      %577 = vmatprep.subr.bf16.mxu0 0
      %578 = vmatpush2.bf16.msra.mxu0 0
      %579 = vmatprep.subr.bf16.mxu0 0
      %580 = vmatpush2.bf16.msra.mxu0 0
      %581 = vmatprep.subr.bf16.mxu0 0
      %582 = vmatpush2.bf16.msra.mxu0 0
      %583 = vmatprep.subr.bf16.mxu0 0
      %584 = vmatpush2.bf16.msra.mxu0 0
      %585 = vmatprep.subr.bf16.mxu0 0
      %586 = vmatpush2.bf16.msra.mxu0 0
      %587 = vmatprep.mubr.bf16.mxu0 0
      %588 = vmatmul.mubr.bf16.gmra.mxu0 %v486
      %v589 = vpop.f32.mrf.mxu0
      %v590 = vadd.f32 0.0, %v589
      %v591 = vpop.f32.mrf.mxu0
      %v592 = vpop.f32.mrf.mxu0
      %v593 = vadd.f32 0.0, %v592
      %v594 = vpop.f32.mrf.mxu0
      %595 = vmatprep.mubr.bf16.mxu0 0
      %596 = vmatmul.mubr.bf16.gmra.mxu0 %v487
      %v597 = vpop.f32.mrf.mxu0
      %v598 = vadd.f32 0.0, %v597
      %v599 = vpop.f32.mrf.mxu0
      %v600 = vpop.f32.mrf.mxu0
      %v601 = vadd.f32 0.0, %v600
      %v602 = vpop.f32.mrf.mxu0
      %603 = vmatprep.mubr.bf16.mxu0 0
      %604 = vmatmul.mubr.bf16.gmra.mxu0 %v488
      %v605 = vpop.f32.mrf.mxu0
      %v606 = vadd.f32 0.0, %v605
      %v607 = vpop.f32.mrf.mxu0
      %v608 = vpop.f32.mrf.mxu0
      %v609 = vadd.f32 0.0, %v608
      %v610 = vpop.f32.mrf.mxu0
      %611 = vmatprep.mubr.bf16.mxu0 0
      %612 = vmatmul.mubr.bf16.gmra.mxu0 %v489
      %v613 = vpop.f32.mrf.mxu0
      %v614 = vadd.f32 0.0, %v613
      %v615 = vpop.f32.mrf.mxu0
      %v616 = vpop.f32.mrf.mxu0
      %v617 = vadd.f32 0.0, %v616
      %v618 = vpop.f32.mrf.mxu0
      %619 = vmatprep.mubr.bf16.mxu0 0
      %620 = vmatmul.mubr.bf16.gmra.mxu0 %v490
      %v621 = vpop.f32.mrf.mxu0
      %v622 = vadd.f32 0.0, %v621
      %v623 = vpop.f32.mrf.mxu0
      %v624 = vpop.f32.mrf.mxu0
      %v625 = vadd.f32 0.0, %v624
      %v626 = vpop.f32.mrf.mxu0
      %627 = vdwg.mxu0
      %v628 = vmax.f32 %v590, 1e-10
      %v629 = vmax.f32 %v593, 1e-10
      %v630 = vmax.f32 %v598, 1e-10
      %v631 = vmax.f32 %v601, 1e-10
      %v632 = vmax.f32 %v606, 1e-10
      %v633 = vmax.f32 %v609, 1e-10
      %v634 = vmax.f32 %v614, 1e-10
      %v635 = vmax.f32 %v617, 1e-10
      %v636 = vmax.f32 %v622, 1e-10
      %v637 = vmax.f32 %v625, 1e-10
      %v638 = vlog2.pop %v628
      %v639 = vmul.f32 %v638, 0.6931472
      %v640 = vlog2.pop %v629
      %v641 = vmul.f32 %v640, 0.6931472
      %v642 = vlog2.pop %v630
      %v643 = vmul.f32 %v642, 0.6931472
      %v644 = vlog2.pop %v631
      %v645 = vmul.f32 %v644, 0.6931472
      %v646 = vlog2.pop %v632
      %v647 = vmul.f32 %v646, 0.6931472
      %v648 = vlog2.pop %v633
      %v649 = vmul.f32 %v648, 0.6931472
      %v650 = vlog2.pop %v634
      %v651 = vmul.f32 %v650, 0.6931472
      %v652 = vlog2.pop %v635
      %v653 = vmul.f32 %v652, 0.6931472
      %v654 = vlog2.pop %v636
      %v655 = vmul.f32 %v654, 0.6931472
      %v656 = vlog2.pop %v637
      %v657 = vmul.f32 %v656, 0.6931472
      %v658 = vmul.f32 %v639, 0.4342945
      %v659 = vmul.f32 %v641, 0.4342945
      %v660 = vmul.f32 %v643, 0.4342945
      %v661 = vmul.f32 %v645, 0.4342945
      %v662 = vmul.f32 %v647, 0.4342945
      %v663 = vmul.f32 %v649, 0.4342945
      %v664 = vmul.f32 %v651, 0.4342945
      %v665 = vmul.f32 %v653, 0.4342945
      %v666 = vmul.f32 %v655, 0.4342945
      %v667 = vmul.f32 %v657, 0.4342945
      %v668 = vpack.c.bf16 %v659, %v658
      %v669 = vpack.c.bf16 %v661, %v660
      %v670 = vpack.c.bf16 %v663, %v662
      %v671 = vpack.c.bf16 %v665, %v664
      %v672 = vpack.c.bf16 %v667, %v666
      %v678 = vunpack.c.l.b16 %v668
      %v679 = vunpack.c.h.b16 %v668
      %v680 = vunpack.c.l.b16 %v669
      %v681 = vunpack.c.h.b16 %v669
      %v682 = vunpack.c.l.b16 %v670
      %v683 = vunpack.c.h.b16 %v670
      %v684 = vunpack.c.l.b16 %v671
      %v685 = vunpack.c.h.b16 %v671
      %v686 = vunpack.c.l.b16 %v672
      %v687 = vunpack.c.h.b16 %v672
      %v688 = vpack.c.b16 %v678, %v678
      %v689 = vpack.c.b16 %v679, %v679
      %v690 = vpack.c.b16 %v680, %v680
      %v691 = vpack.c.b16 %v681, %v681
      %v692 = vpack.c.b16 %v682, %v682
      %v693 = vpack.c.b16 %v683, %v683
      %v694 = vpack.c.b16 %v684, %v684
      %v695 = vpack.c.b16 %v685, %v685
      %v696 = vpack.c.b16 %v686, %v686
      %v697 = vpack.c.b16 %v687, %v687
      %708 = vst [vmem:[%s204] sm:$0xf] %v688
      %709 = vst [vmem:[%s204 + $0x4] sm:$0xf] %v689
      %710 = vst [vmem:[%s204 + $0x8] sm:$0xf] %v690
      %711 = vst [vmem:[%s204 + $0xc] sm:$0xf] %v691
      %712 = vst [vmem:[%s204 + $0x10] sm:$0xf] %v692
      %713 = vst [vmem:[%s204 + $0x14] sm:$0xf] %v693
      %714 = vst [vmem:[%s204 + $0x18] sm:$0xf] %v694
      %715 = vst [vmem:[%s204 + $0x1c] sm:$0xf] %v695
      %716 = vst [vmem:[%s204 + $0x20] sm:$0xf] %v696
      %717 = vst [vmem:[%s204 + $0x24] sm:$0xf] %v697
      %v718 = vmax.f32 %v658, %v662
      %v719 = vmax.f32 %v659, %v663
      %v720 = vmax.f32 %v660, %v664
      %v721 = vmax.f32 %v661, %v665
      %v722 = vmax.f32 %v718, %v666
      %v723 = vmax.f32 %v719, %v667
      %v724 = vmax.f32 %v722, %v723
      %v725 = vmax.f32 %v720, %v721
      %v726 = vmax.f32 %v724, %v725
      %v727 = vrot.slane %v726, 4
      %v728 = vmax.f32 %v726, %v727
      %v729 = vrot.slane %v728, 2
      %v730 = vmax.f32 %v728, %v729
      %v731 = vrot.slane %v730, 1
      %v732 = vmax.f32 %v730, %v731
      %733 = vst [vmem:[%s208] sm:$0xff] %v732
      %p734 = scmp.lt.s32.totalorder %s16, 1
      %s735 = scalar_select %p734, %s16, 1
      %s736 = smul.addr %s735, 10
      %s737 = smul.addr %s736, 4
      %s738 = scalar_lea.vmem %s3, %s737
      %p739 = scmp.lt.s32.totalorder %s16, 1
      %s740 = scalar_select %p739, %s16, 1
      %s741 = smul.addr %s740, 8
      %s742 = scalar_lea.vmem %s4, %s741
      // Predicated region
      $region33: #{_lambda_.2} parent=31 // pred_check
        %p743 = pneg %p102
      $region34: #{_lambda_.2} parent=31 // pred_check_branch
        %745 = sbr.rel (%p743) target = $region36
      $region35: #{_lambda_.2} parent=31 // pred_region
        _
      $region36: #{_lambda_.2} parent=31 // pred_fallthru
        _
      // Predicated region
      $region37: #{_lambda_.2} parent=31 // pred_check
        %p746 = pneg %p128
      $region38: #{_lambda_.2} parent=31 // pred_check_branch
        %748 = sbr.rel (%p746) target = $region40
      $region39: #{_lambda_.2} parent=31 // pred_region
        _
      $region40: #{_lambda_.2} parent=31 // pred_fallthru
        _
    $region32: #{_lambda_.2} parent=5 // pred_fallthru
      _
    %p749 = scmp.le.s32.totalorder 2, %s11
    // Predicated region
    $region41: #{_lambda_.2} parent=5 // pred_check
      %p750 = pneg %p749
    $region42: #{_lambda_.2} parent=5 // pred_check_branch
      %752 = sbr.rel (%p750) target = $region44
    $region43: #{_lambda_.2} parent=5 // pred_region
      %s753 = ssub.s32 %s11, 2
      // Predicated region
      $region45: #{_lambda_.2} parent=43 // pred_check
        %p754 = pneg %p108
      $region46: #{_lambda_.2} parent=43 // pred_check_branch
        %756 = sbr.rel (%p754) target = $region48
      $region47: #{_lambda_.2} parent=43 // pred_region
        %p757 = scmp.lt.s32.totalorder %s17, 1
        %s758 = scalar_select %p757, %s17, 1
        %s759 = smul.addr %s758, 10
        %s760 = smul.addr %s759, 4
        %s761 = scalar_lea.vmem %s3, %s760
      $region48: #{_lambda_.2} parent=43 // pred_fallthru
        _
      // Predicated region
      $region49: #{_lambda_.2} parent=43 // pred_check
        %p762 = pneg %p134
      $region50: #{_lambda_.2} parent=43 // pred_check_branch
        %764 = sbr.rel (%p762) target = $region52
      $region51: #{_lambda_.2} parent=43 // pred_region
        %p765 = scmp.lt.s32.totalorder %s17, 1
        %s766 = scalar_select %p765, %s17, 1
        %s767 = smul.addr %s766, 8
        %s768 = scalar_lea.vmem %s4, %s767
      $region52: #{_lambda_.2} parent=43 // pred_fallthru
        _
    $region44: #{_lambda_.2} parent=5 // pred_fallthru
      _
  $region6: #{_lambda_.2} parent=0 // loop_footer
    %s15 = sadd.s32 1, %s11
  $region7: #{_lambda_.2} parent=0 // loop_footer_branch
    %10 = sbr.rel target = $region3
  $region8: #{_lambda_.2} parent=0 // loop_exit
    _

// kernel: _lambda_.3
$region0: #{_lambda_.3}
  #allocation0 [shape = 'u32[]', space=smem, size = 0x4, offset = 0x4, fixed_abs, tag = 'smem constant byte address 0x4 - core index']
  #allocation1 [shape = 'u32[144,128]{1,0:T(1,128)}', space=vmem, size = 0x12000, scoped, tag = 'internal scratch']
  #allocation2 [shape = 'f32[1]{0:T(128)S(6)}', space=smem, size = 0x200, scoped, tag = 'scoped memory for _lambda_.3']
  %s0 = inlined_call_operand.<no memory space> [shape: f32[1], index: 0, kind: input, shape index: {}]
  %s1 = inlined_call_operand.vmem [shape: bf16[2,80,128], index: 1, kind: input, shape index: {}]
  %s2 = inlined_call_operand.vmem [shape: bf16[2,4,32], index: 2, kind: input, shape index: {}]
  %s3 = inlined_call_operand.vmem [shape: bf16[128,32], index: 3, kind: input, shape index: {}]
  %s4 = inlined_call_operand.vmem [shape: f32[1,32], index: 4, kind: input, shape index: {}]
  %s5 = inlined_call_operand.vmem [shape: bf16[32,128], index: 5, kind: input, shape index: {}]
  %s6 = inlined_call_operand.hbm [shape: f32[8,128], index: 6, kind: output, shape index: {}]
  %s7 = sld [smem:[#allocation0]]
  $region75: #{_lambda_.3} parent=0
    _
  %s9 = ssub.s32 1, %s7
  %s10 = scalar_select 0, %s9, %s7
  %11 = sst [smem:[#allocation2]] %s0
  $region1: #{_lambda_.3} parent=0
    #allocation3 [shape = 'u8[32768]{0}', space=vmem, size = 0x8000, scoped, tag = 'input window, operand 1, single buffered']
    #allocation4 [shape = 'u8[4096]{0}', space=vmem, size = 0x1000, scoped, tag = 'output window, operand 0, single buffered']
    #allocation5 [shape = 's32[1]{0}', space=sflag, size = 0x4, scoped, tag = 'scoped memory for _lambda_.3']
    %12 = vsyncpa [#allocation5], 0
    // Predicated region
    $region2: #{_lambda_.3} parent=1 // pred_check
      _
    $region3: #{_lambda_.3} parent=1 // pred_check_branch
      %14 = sbr.rel (0) target = $region5
    $region4: #{_lambda_.3} parent=1 // pred_region
      _
    $region5: #{_lambda_.3} parent=1 // pred_fallthru
      _
    // Predicated region
    $region6: #{_lambda_.3} parent=1 // pred_check
      _
    $region7: #{_lambda_.3} parent=1 // pred_check_branch
      %16 = sbr.rel (0) target = $region9
    $region8: #{_lambda_.3} parent=1 // pred_region
      // Predicated region
      $region10: #{_lambda_.3} parent=8 // pred_check
        _
      $region11: #{_lambda_.3} parent=8 // pred_check_branch
        %18 = sbr.rel (0) target = $region13
      $region12: #{_lambda_.3} parent=8 // pred_region
        // Predicated region
        $region14: #{_lambda_.3} parent=12 // pred_check
          _
        $region15: #{_lambda_.3} parent=12 // pred_check_branch
          %20 = sbr.rel target = $region17
        $region16: #{_lambda_.3} parent=12 // pred_region
          // Predicated region
          $region29: #{_lambda_.3} parent=16 // pred_check
            _
          $region30: #{_lambda_.3} parent=16 // pred_check_branch
            %66 = sbr.rel (0) target = $region32
          $region31: #{_lambda_.3} parent=16 // pred_region
            loop: start=0, step=1, limit=1
            $region33: #{_lambda_.3} parent=31 // loop_pre_header
              _
            $region34: #{_lambda_.3} parent=31 // loop_header
              %s68 = sphi 0, %s72
              %p69 = scmp.ge.s32.totalorder %s68, 1
              %s73 = sphi %s1, %s1
              %s74 = sphi [#allocation3], [#allocation3]
            $region35: #{_lambda_.3} parent=31 // loop_header_branch
              %71 = sbr.rel (%p69) target = $region39
            $region36: #{_lambda_.3} parent=31 // loop_body
              _
            $region37: #{_lambda_.3} parent=31 // loop_footer
              %s72 = sadd.s32 1, %s68
            $region38: #{_lambda_.3} parent=31 // loop_footer_branch
              %67 = sbr.rel target = $region34
            $region39: #{_lambda_.3} parent=31 // loop_exit
              _
            %s76 = ssub.s32 16, 1
            loop: start=0, step=1, limit=1
            $region40: #{_lambda_.3} parent=31 // loop_pre_header
              _
            $region41: #{_lambda_.3} parent=31 // loop_header
              %s78 = sphi 0, %s82
              %p79 = scmp.ge.s32.totalorder %s78, 1
              %s83 = sphi %s1, %s1
              %s84 = sphi [#allocation3], [#allocation3]
            $region42: #{_lambda_.3} parent=31 // loop_header_branch
              %81 = sbr.rel (%p79) target = $region46
            $region43: #{_lambda_.3} parent=31 // loop_body
              %v85 = vld [vmem:[%s83] sm:%s76]
              %86 = vst [vmem:[%s84] sm:%s76] %v85
              %v87 = vld [vmem:[%s83 + $0x4] sm:%s76]
              %88 = vst [vmem:[%s84 + $0x4] sm:%s76] %v87
              %v89 = vld [vmem:[%s83 + $0x8] sm:%s76]
              %90 = vst [vmem:[%s84 + $0x8] sm:%s76] %v89
              %v91 = vld [vmem:[%s83 + $0xc] sm:%s76]
              %92 = vst [vmem:[%s84 + $0xc] sm:%s76] %v91
              %v93 = vld [vmem:[%s83 + $0x10] sm:%s76]
              %94 = vst [vmem:[%s84 + $0x10] sm:%s76] %v93
              %v95 = vld [vmem:[%s83 + $0x14] sm:%s76]
              %96 = vst [vmem:[%s84 + $0x14] sm:%s76] %v95
              %v97 = vld [vmem:[%s83 + $0x18] sm:%s76]
              %98 = vst [vmem:[%s84 + $0x18] sm:%s76] %v97
              %v99 = vld [vmem:[%s83 + $0x1c] sm:%s76]
              %100 = vst [vmem:[%s84 + $0x1c] sm:%s76] %v99
              %v101 = vld [vmem:[%s83 + $0x28] sm:%s76]
              %102 = vst [vmem:[%s84 + $0x20] sm:%s76] %v101
              %v103 = vld [vmem:[%s83 + $0x2c] sm:%s76]
              %104 = vst [vmem:[%s84 + $0x24] sm:%s76] %v103
              %v105 = vld [vmem:[%s83 + $0x30] sm:%s76]
              %106 = vst [vmem:[%s84 + $0x28] sm:%s76] %v105
              %v107 = vld [vmem:[%s83 + $0x34] sm:%s76]
              %108 = vst [vmem:[%s84 + $0x2c] sm:%s76] %v107
              %v109 = vld [vmem:[%s83 + $0x38] sm:%s76]
              %110 = vst [vmem:[%s84 + $0x30] sm:%s76] %v109
              %v111 = vld [vmem:[%s83 + $0x3c] sm:%s76]
              %112 = vst [vmem:[%s84 + $0x34] sm:%s76] %v111
              %v113 = vld [vmem:[%s83 + $0x40] sm:%s76]
              %114 = vst [vmem:[%s84 + $0x38] sm:%s76] %v113
              %v115 = vld [vmem:[%s83 + $0x44] sm:%s76]
              %116 = vst [vmem:[%s84 + $0x3c] sm:%s76] %v115
            $region44: #{_lambda_.3} parent=31 // loop_footer
              %s82 = sadd.s32 1, %s78
            $region45: #{_lambda_.3} parent=31 // loop_footer_branch
              %77 = sbr.rel target = $region41
            $region46: #{_lambda_.3} parent=31 // loop_exit
              _
          $region32: #{_lambda_.3} parent=16 // pred_fallthru
            _
        $region17: #{_lambda_.3} parent=12 // pred_fallthru
          _
        // Predicated region
        $region18: #{_lambda_.3} parent=12 // pred_check
          _
        $region19: #{_lambda_.3} parent=12 // pred_check_branch
          %22 = sbr.rel (0) target = $region21
        $region20: #{_lambda_.3} parent=12 // pred_region
          %s24 = ssub.s32 16, 1
          loop: start=0, step=1, limit=1
          $region22: #{_lambda_.3} parent=20 // loop_pre_header
            _
          $region23: #{_lambda_.3} parent=20 // loop_header
            %s26 = sphi 0, %s30
            %p27 = scmp.ge.s32.totalorder %s26, 1
            %s31 = sphi %s1, %s1
            %s32 = sphi [#allocation3], [#allocation3]
          $region24: #{_lambda_.3} parent=20 // loop_header_branch
            %29 = sbr.rel (%p27) target = $region28
          $region25: #{_lambda_.3} parent=20 // loop_body
            %v33 = vld [vmem:[%s31] sm:%s24]
            %34 = vst [vmem:[%s32] sm:%s24] %v33
            %v35 = vld [vmem:[%s31 + $0x4] sm:%s24]
            %36 = vst [vmem:[%s32 + $0x4] sm:%s24] %v35
            %v37 = vld [vmem:[%s31 + $0x8] sm:%s24]
            %38 = vst [vmem:[%s32 + $0x8] sm:%s24] %v37
            %v39 = vld [vmem:[%s31 + $0xc] sm:%s24]
            %40 = vst [vmem:[%s32 + $0xc] sm:%s24] %v39
            %v41 = vld [vmem:[%s31 + $0x10] sm:%s24]
            %42 = vst [vmem:[%s32 + $0x10] sm:%s24] %v41
            %v43 = vld [vmem:[%s31 + $0x14] sm:%s24]
            %44 = vst [vmem:[%s32 + $0x14] sm:%s24] %v43
            %v45 = vld [vmem:[%s31 + $0x18] sm:%s24]
            %46 = vst [vmem:[%s32 + $0x18] sm:%s24] %v45
            %v47 = vld [vmem:[%s31 + $0x1c] sm:%s24]
            %48 = vst [vmem:[%s32 + $0x1c] sm:%s24] %v47
            %v49 = vld [vmem:[%s31 + $0x28] sm:%s24]
            %50 = vst [vmem:[%s32 + $0x20] sm:%s24] %v49
            %v51 = vld [vmem:[%s31 + $0x2c] sm:%s24]
            %52 = vst [vmem:[%s32 + $0x24] sm:%s24] %v51
            %v53 = vld [vmem:[%s31 + $0x30] sm:%s24]
            %54 = vst [vmem:[%s32 + $0x28] sm:%s24] %v53
            %v55 = vld [vmem:[%s31 + $0x34] sm:%s24]
            %56 = vst [vmem:[%s32 + $0x2c] sm:%s24] %v55
            %v57 = vld [vmem:[%s31 + $0x38] sm:%s24]
            %58 = vst [vmem:[%s32 + $0x30] sm:%s24] %v57
            %v59 = vld [vmem:[%s31 + $0x3c] sm:%s24]
            %60 = vst [vmem:[%s32 + $0x34] sm:%s24] %v59
            %v61 = vld [vmem:[%s31 + $0x40] sm:%s24]
            %62 = vst [vmem:[%s32 + $0x38] sm:%s24] %v61
            %v63 = vld [vmem:[%s31 + $0x44] sm:%s24]
            %64 = vst [vmem:[%s32 + $0x3c] sm:%s24] %v63
          $region26: #{_lambda_.3} parent=20 // loop_footer
            %s30 = sadd.s32 1, %s26
          $region27: #{_lambda_.3} parent=20 // loop_footer_branch
            %25 = sbr.rel target = $region23
          $region28: #{_lambda_.3} parent=20 // loop_exit
            _
        $region21: #{_lambda_.3} parent=12 // pred_fallthru
          _
      $region13: #{_lambda_.3} parent=8 // pred_fallthru
        _
      %117 = vnop
    $region9: #{_lambda_.3} parent=1 // pred_fallthru
      _
    // Predicated region
    $region47: #{_lambda_.3} parent=1 // pred_check
      _
    $region48: #{_lambda_.3} parent=1 // pred_check_branch
      %119 = sbr.rel (0) target = $region50
    $region49: #{_lambda_.3} parent=1 // pred_region
      _
    $region50: #{_lambda_.3} parent=1 // pred_fallthru
      _
    // Predicated region
    $region51: #{_lambda_.3} parent=1 // pred_check
      _
    $region52: #{_lambda_.3} parent=1 // pred_check_branch
      %121 = sbr.rel (0) target = $region54
    $region53: #{_lambda_.3} parent=1 // pred_region
      _
    $region54: #{_lambda_.3} parent=1 // pred_fallthru
      _
    // Predicated region
    $region55: #{_lambda_.3} parent=1 // pred_check
      _
    $region56: #{_lambda_.3} parent=1 // pred_check_branch
      %123 = sbr.rel (0) target = $region58
    $region57: #{_lambda_.3} parent=1 // pred_region
      _
    $region58: #{_lambda_.3} parent=1 // pred_fallthru
      _
    // Predicated region
    $region59: #{_lambda_.3} parent=1 // pred_check
      _
    $region60: #{_lambda_.3} parent=1 // pred_check_branch
      %125 = sbr.rel (0) target = $region62
    $region61: #{_lambda_.3} parent=1 // pred_region
      _
    $region62: #{_lambda_.3} parent=1 // pred_fallthru
      _
    // Predicated region
    $region63: #{_lambda_.3} parent=1 // pred_check
      _
    $region64: #{_lambda_.3} parent=1 // pred_check_branch
      %127 = sbr.rel (0) target = $region66
    $region65: #{_lambda_.3} parent=1 // pred_region
      _
    $region66: #{_lambda_.3} parent=1 // pred_fallthru
      _
    %s129 = sld [smem:[#allocation2]]
    %s130 = ssub.f32 %s129, 8.0
    %p132 = scmp.ne.f32.partialorder %s130, %s130
    %s133 = sshrl.u32 %s130, 16
    %s134 = sand.u32 %s133, 1
    %s135 = sadd.s32 32767, %s134
    %s136 = sadd.s32 %s130, %s135
    %s137 = sand.u32 %s136, 4294901760
    %s138 = scalar_select %p132, 2143289344, %s137
    %s140 = sshrl.u32 %s138, 16
    %v141 = vld [vmem:[#allocation3] sm:$0xf]
    %v142 = vld [vmem:[#allocation3 + $0x4] sm:$0xf]
    %v143 = vld [vmem:[#allocation3 + $0x8] sm:$0xf]
    %v144 = vld [vmem:[#allocation3 + $0xc] sm:$0xf]
    %v145 = vld [vmem:[#allocation3 + $0x10] sm:$0xf]
    %v146 = vld [vmem:[#allocation3 + $0x14] sm:$0xf]
    %v147 = vld [vmem:[#allocation3 + $0x18] sm:$0xf]
    %v148 = vld [vmem:[#allocation3 + $0x1c] sm:$0xf]
    %v149 = vld [vmem:[#allocation3 + $0x20] sm:$0xf]
    %v150 = vld [vmem:[#allocation3 + $0x24] sm:$0xf]
    %v151 = vld [vmem:[#allocation3 + $0x28] sm:$0xf]
    %v152 = vld [vmem:[#allocation3 + $0x2c] sm:$0xf]
    %v153 = vld [vmem:[#allocation3 + $0x30] sm:$0xf]
    %v154 = vld [vmem:[#allocation3 + $0x34] sm:$0xf]
    %v155 = vld [vmem:[#allocation3 + $0x38] sm:$0xf]
    %v156 = vld [vmem:[#allocation3 + $0x3c] sm:$0xf]
    %s157 = sshll.u32 %s140, 16
    %s158 = sor.u32 %s140, %s157
    %v159 = vstv %s158
    %v161 = vmax.bf16 %v141, %v159
    %v162 = vmax.bf16 %v142, %v159
    %v163 = vmax.bf16 %v143, %v159
    %v164 = vmax.bf16 %v144, %v159
    %v165 = vmax.bf16 %v145, %v159
    %v166 = vmax.bf16 %v146, %v159
    %v167 = vmax.bf16 %v147, %v159
    %v168 = vmax.bf16 %v148, %v159
    %v169 = vmax.bf16 %v149, %v159
    %v170 = vmax.bf16 %v150, %v159
    %v171 = vmax.bf16 %v151, %v159
    %v172 = vmax.bf16 %v152, %v159
    %v173 = vmax.bf16 %v153, %v159
    %v174 = vmax.bf16 %v154, %v159
    %v175 = vmax.bf16 %v155, %v159
    %v176 = vmax.bf16 %v156, %v159
    %v177 = vld [vmem:[%s3] sm:$0xf]
    %v178 = vld [vmem:[%s3 + $0x4] sm:$0xf]
    %v179 = vld [vmem:[%s3 + $0x8] sm:$0xf]
    %v180 = vld [vmem:[%s3 + $0xc] sm:$0xf]
    %v181 = vld [vmem:[%s3 + $0x10] sm:$0xf]
    %v182 = vld [vmem:[%s3 + $0x14] sm:$0xf]
    %v183 = vld [vmem:[%s3 + $0x18] sm:$0xf]
    %v184 = vld [vmem:[%s3 + $0x1c] sm:$0xf]
    %v185 = vld [vmem:[%s3 + $0x20] sm:$0xf]
    %v186 = vld [vmem:[%s3 + $0x24] sm:$0xf]
    %v187 = vld [vmem:[%s3 + $0x28] sm:$0xf]
    %v188 = vld [vmem:[%s3 + $0x2c] sm:$0xf]
    %v189 = vld [vmem:[%s3 + $0x30] sm:$0xf]
    %v190 = vld [vmem:[%s3 + $0x34] sm:$0xf]
    %v191 = vld [vmem:[%s3 + $0x38] sm:$0xf]
    %v192 = vld [vmem:[%s3 + $0x3c] sm:$0xf]
    %v193 = vld [vmem:[%s4] sm:$0x1]
    %v195 = vlaneseq
    %v196 = vshrl.u32 %v195, 7
    %v197 = vsub.s32 0, %v196
    %v198 = vrot.slane %v193, %v197
    %v216 = vunpack.c.l.b16 %v161
    %v217 = vunpack.c.l.b16 %v162
    %v218 = vunpack.c.l.b16 %v163
    %v219 = vunpack.c.l.b16 %v164
    %v220 = vunpack.c.l.b16 %v165
    %v221 = vunpack.c.l.b16 %v166
    %v222 = vunpack.c.l.b16 %v167
    %v223 = vunpack.c.l.b16 %v168
    %v224 = vunpack.c.l.b16 %v169
    %v225 = vunpack.c.l.b16 %v170
    %v226 = vunpack.c.l.b16 %v171
    %v227 = vunpack.c.l.b16 %v172
    %v228 = vunpack.c.l.b16 %v173
    %v229 = vunpack.c.l.b16 %v174
    %v230 = vunpack.c.l.b16 %v175
    %v231 = vunpack.c.l.b16 %v176
    %v232 = vpack.c.b16 %v217, %v216
    %v233 = vpack.c.b16 %v219, %v218
    %v234 = vpack.c.b16 %v221, %v220
    %v235 = vpack.c.b16 %v223, %v222
    %v236 = vpack.c.b16 %v225, %v224
    %v237 = vpack.c.b16 %v227, %v226
    %v238 = vpack.c.b16 %v229, %v228
    %v239 = vpack.c.b16 %v231, %v230
    %v264 = vunpack.c.l.b16 %v177
    %v265 = vunpack.c.l.b16 %v178
    %v266 = vunpack.c.l.b16 %v179
    %v267 = vunpack.c.l.b16 %v180
    %v268 = vunpack.c.l.b16 %v181
    %v269 = vunpack.c.l.b16 %v182
    %v270 = vunpack.c.l.b16 %v183
    %v271 = vunpack.c.l.b16 %v184
    %v272 = vunpack.c.l.b16 %v185
    %v273 = vunpack.c.l.b16 %v186
    %v274 = vunpack.c.l.b16 %v187
    %v275 = vunpack.c.l.b16 %v188
    %v276 = vunpack.c.l.b16 %v189
    %v277 = vunpack.c.l.b16 %v190
    %v278 = vunpack.c.l.b16 %v191
    %v279 = vunpack.c.l.b16 %v192
    %v280 = vpack.c.b16 %v265, %v264
    %v281 = vpack.c.b16 %v267, %v266
    %v282 = vpack.c.b16 %v269, %v268
    %v283 = vpack.c.b16 %v271, %v270
    %v284 = vpack.c.b16 %v273, %v272
    %v285 = vpack.c.b16 %v275, %v274
    %v286 = vpack.c.b16 %v277, %v276
    %v287 = vpack.c.b16 %v279, %v278
    %296 = vmatprep.subr.bf16.mxu0 0
    %297 = vmatpush1.bf16.msra.mxu0 %v287
    %298 = vmatprep.subr.bf16.mxu0 0
    %299 = vmatpush1.bf16.msra.mxu0 %v286
    %300 = vmatprep.subr.bf16.mxu0 0
    %301 = vmatpush1.bf16.msra.mxu0 %v285
    %302 = vmatprep.subr.bf16.mxu0 0
    %303 = vmatpush1.bf16.msra.mxu0 %v284
    %304 = vmatprep.subr.bf16.mxu0 0
    %305 = vmatpush1.bf16.msra.mxu0 %v283
    %306 = vmatprep.subr.bf16.mxu0 0
    %307 = vmatpush1.bf16.msra.mxu0 %v282
    %308 = vmatprep.subr.bf16.mxu0 0
    %309 = vmatpush1.bf16.msra.mxu0 %v281
    %310 = vmatprep.subr.bf16.mxu0 0
    %311 = vmatpush1.bf16.msra.mxu0 %v280
    %312 = vmatprep.subr.bf16.mxu0 0
    %313 = vmatpush2.bf16.msra.mxu0 0
    %314 = vmatprep.subr.bf16.mxu0 0
    %315 = vmatpush2.bf16.msra.mxu0 0
    %316 = vmatprep.subr.bf16.mxu0 0
    %317 = vmatpush2.bf16.msra.mxu0 0
    %318 = vmatprep.subr.bf16.mxu0 0
    %319 = vmatpush2.bf16.msra.mxu0 0
    %320 = vmatprep.subr.bf16.mxu0 0
    %321 = vmatpush2.bf16.msra.mxu0 0
    %322 = vmatprep.subr.bf16.mxu0 0
    %323 = vmatpush2.bf16.msra.mxu0 0
    %324 = vmatprep.subr.bf16.mxu0 0
    %325 = vmatpush2.bf16.msra.mxu0 0
    %326 = vmatprep.subr.bf16.mxu0 0
    %327 = vmatpush2.bf16.msra.mxu0 0
    %328 = vmatprep.mubr.bf16.mxu0 0
    %329 = vmatmul.mubr.bf16.gmra.mxu0 %v232
    %v330 = vpop.f32.mrf.mxu0
    %v331 = vadd.f32 %v198, %v330
    %v332 = vpop.f32.mrf.mxu0
    %v333 = vpop.f32.mrf.mxu0
    %v334 = vadd.f32 %v198, %v333
    %v335 = vpop.f32.mrf.mxu0
    %336 = vmatprep.mubr.bf16.mxu0 0
    %337 = vmatmul.mubr.bf16.gmra.mxu0 %v233
    %v338 = vpop.f32.mrf.mxu0
    %v339 = vadd.f32 %v198, %v338
    %v340 = vpop.f32.mrf.mxu0
    %v341 = vpop.f32.mrf.mxu0
    %v342 = vadd.f32 %v198, %v341
    %v343 = vpop.f32.mrf.mxu0
    %344 = vmatprep.mubr.bf16.mxu0 0
    %345 = vmatmul.mubr.bf16.gmra.mxu0 %v234
    %v346 = vpop.f32.mrf.mxu0
    %v347 = vadd.f32 %v198, %v346
    %v348 = vpop.f32.mrf.mxu0
    %v349 = vpop.f32.mrf.mxu0
    %v350 = vadd.f32 %v198, %v349
    %v351 = vpop.f32.mrf.mxu0
    %352 = vmatprep.mubr.bf16.mxu0 0
    %353 = vmatmul.mubr.bf16.gmra.mxu0 %v235
    %v354 = vpop.f32.mrf.mxu0
    %v355 = vadd.f32 %v198, %v354
    %v356 = vpop.f32.mrf.mxu0
    %v357 = vpop.f32.mrf.mxu0
    %v358 = vadd.f32 %v198, %v357
    %v359 = vpop.f32.mrf.mxu0
    %360 = vmatprep.mubr.bf16.mxu0 0
    %361 = vmatmul.mubr.bf16.gmra.mxu0 %v236
    %v362 = vpop.f32.mrf.mxu0
    %v363 = vadd.f32 %v198, %v362
    %v364 = vpop.f32.mrf.mxu0
    %v365 = vpop.f32.mrf.mxu0
    %v366 = vadd.f32 %v198, %v365
    %v367 = vpop.f32.mrf.mxu0
    %368 = vmatprep.mubr.bf16.mxu0 0
    %369 = vmatmul.mubr.bf16.gmra.mxu0 %v237
    %v370 = vpop.f32.mrf.mxu0
    %v371 = vadd.f32 %v198, %v370
    %v372 = vpop.f32.mrf.mxu0
    %v373 = vpop.f32.mrf.mxu0
    %v374 = vadd.f32 %v198, %v373
    %v375 = vpop.f32.mrf.mxu0
    %376 = vmatprep.mubr.bf16.mxu0 0
    %377 = vmatmul.mubr.bf16.gmra.mxu0 %v238
    %v378 = vpop.f32.mrf.mxu0
    %v379 = vadd.f32 %v198, %v378
    %v380 = vpop.f32.mrf.mxu0
    %v381 = vpop.f32.mrf.mxu0
    %v382 = vadd.f32 %v198, %v381
    %v383 = vpop.f32.mrf.mxu0
    %384 = vmatprep.mubr.bf16.mxu0 0
    %385 = vmatmul.mubr.bf16.gmra.mxu0 %v239
    %v386 = vpop.f32.mrf.mxu0
    %v387 = vadd.f32 %v198, %v386
    %v388 = vpop.f32.mrf.mxu0
    %v389 = vpop.f32.mrf.mxu0
    %v390 = vadd.f32 %v198, %v389
    %v391 = vpop.f32.mrf.mxu0
    %392 = vdwg.mxu0
    %v393 = vtanh.pop %v331
    %v394 = vtanh.pop %v334
    %v395 = vtanh.pop %v339
    %v396 = vtanh.pop %v342
    %v397 = vtanh.pop %v347
    %v398 = vtanh.pop %v350
    %v399 = vtanh.pop %v355
    %v400 = vtanh.pop %v358
    %v401 = vtanh.pop %v363
    %v402 = vtanh.pop %v366
    %v403 = vtanh.pop %v371
    %v404 = vtanh.pop %v374
    %v405 = vtanh.pop %v379
    %v406 = vtanh.pop %v382
    %v407 = vtanh.pop %v387
    %v408 = vtanh.pop %v390
    %v409 = vpack.c.bf16 %v394, %v393
    %v410 = vpack.c.bf16 %v396, %v395
    %v411 = vpack.c.bf16 %v398, %v397
    %v412 = vpack.c.bf16 %v400, %v399
    %v413 = vpack.c.bf16 %v402, %v401
    %v414 = vpack.c.bf16 %v404, %v403
    %v415 = vpack.c.bf16 %v406, %v405
    %v416 = vpack.c.bf16 %v408, %v407
    %v417 = vld [vmem:[%s2] sm:$0x3]
    %v418 = vld [vmem:[%s2 + $0x2] sm:$0x3]
    %v419 = vunpack.c.l.bf16 %v417
    %v420 = vunpack.c.l.bf16 %v418
    %v421 = vmul.f32 %v419, 0.17677669
    %v422 = vmul.f32 %v420, 0.17677669
    %v423 = vpack.c.bf16 %v421, %v421
    %v424 = vpack.c.bf16 %v422, %v422
    %vm425 = vcmask 261120
    %v427 = vsel %vm425, %v423, 0
    %v430 = vsel %vm425, %v409, 0
    %v433 = vsel %vm425, %v410, 0
    %v436 = vsel %vm425, %v411, 0
    %v439 = vsel %vm425, %v412, 0
    %441 = vmatprep.subr.bf16.mxu0 0
    %442 = vmatpush1.bf16.xpose.msra.mxu0 0
    %443 = vmatprep.subr.bf16.mxu0 0
    %444 = vmatpush1.bf16.xpose.msra.mxu0 0
    %445 = vmatprep.subr.bf16.mxu0 0
    %446 = vmatpush1.bf16.xpose.msra.mxu0 0
    %447 = vmatprep.subr.bf16.mxu0 0
    %448 = vmatpush1.bf16.xpose.msra.mxu0 0
    %449 = vmatprep.subr.bf16.mxu0 0
    %450 = vmatpush1.bf16.xpose.msra.mxu0 %v439
    %451 = vmatprep.subr.bf16.mxu0 0
    %452 = vmatpush1.bf16.xpose.msra.mxu0 %v436
    %453 = vmatprep.subr.bf16.mxu0 0
    %454 = vmatpush1.bf16.xpose.msra.mxu0 %v433
    %455 = vmatprep.subr.bf16.mxu0 0
    %456 = vmatpush1.bf16.xpose.msra.mxu0 %v430
    %457 = vmatprep.subr.bf16.mxu0 0
    %458 = vmatpush2.bf16.xpose.msra.mxu0 0
    %459 = vmatprep.subr.bf16.mxu0 0
    %460 = vmatpush2.bf16.xpose.msra.mxu0 0
    %461 = vmatprep.subr.bf16.mxu0 0
    %462 = vmatpush2.bf16.xpose.msra.mxu0 0
    %463 = vmatprep.subr.bf16.mxu0 0
    %464 = vmatpush2.bf16.xpose.msra.mxu0 0
    %465 = vmatprep.subr.bf16.mxu0 0
    %466 = vmatpush2.bf16.xpose.msra.mxu0 0
    %467 = vmatprep.subr.bf16.mxu0 0
    %468 = vmatpush2.bf16.xpose.msra.mxu0 0
    %469 = vmatprep.subr.bf16.mxu0 0
    %470 = vmatpush2.bf16.xpose.msra.mxu0 0
    %471 = vmatprep.subr.bf16.mxu0 0
    %472 = vmatpush2.bf16.xpose.msra.mxu0 0
    %473 = vmatprep.mubr.bf16.mxu0 0
    %474 = vmatmul.mubr.bf16.gmra.mxu0 %v427
    %v475 = vpop.f32.mrf.mxu0
    %v476 = vadd.f32 0.0, %v475
    %v477 = vpop.f32.mrf.mxu0
    %v478 = vpop.f32.mrf.mxu0
    %v479 = vpop.f32.mrf.mxu0
    %480 = vdwg.mxu0
    %v482 = vsel %vm425, %v424, 0
    %v485 = vsel %vm425, %v413, 0
    %v488 = vsel %vm425, %v414, 0
    %v491 = vsel %vm425, %v415, 0
    %v494 = vsel %vm425, %v416, 0
    %496 = vmatprep.subr.bf16.mxu0 0
    %497 = vmatpush1.bf16.xpose.msra.mxu0 0
    %498 = vmatprep.subr.bf16.mxu0 0
    %499 = vmatpush1.bf16.xpose.msra.mxu0 0
    %500 = vmatprep.subr.bf16.mxu0 0
    %501 = vmatpush1.bf16.xpose.msra.mxu0 0
    %502 = vmatprep.subr.bf16.mxu0 0
    %503 = vmatpush1.bf16.xpose.msra.mxu0 0
    %504 = vmatprep.subr.bf16.mxu0 0
    %505 = vmatpush1.bf16.xpose.msra.mxu0 %v494
    %506 = vmatprep.subr.bf16.mxu0 0
    %507 = vmatpush1.bf16.xpose.msra.mxu0 %v491
    %508 = vmatprep.subr.bf16.mxu0 0
    %509 = vmatpush1.bf16.xpose.msra.mxu0 %v488
    %510 = vmatprep.subr.bf16.mxu0 0
    %511 = vmatpush1.bf16.xpose.msra.mxu0 %v485
    %512 = vmatprep.subr.bf16.mxu0 0
    %513 = vmatpush2.bf16.xpose.msra.mxu0 0
    %514 = vmatprep.subr.bf16.mxu0 0
    %515 = vmatpush2.bf16.xpose.msra.mxu0 0
    %516 = vmatprep.subr.bf16.mxu0 0
    %517 = vmatpush2.bf16.xpose.msra.mxu0 0
    %518 = vmatprep.subr.bf16.mxu0 0
    %519 = vmatpush2.bf16.xpose.msra.mxu0 0
    %520 = vmatprep.subr.bf16.mxu0 0
    %521 = vmatpush2.bf16.xpose.msra.mxu0 0
    %522 = vmatprep.subr.bf16.mxu0 0
    %523 = vmatpush2.bf16.xpose.msra.mxu0 0
    %524 = vmatprep.subr.bf16.mxu0 0
    %525 = vmatpush2.bf16.xpose.msra.mxu0 0
    %526 = vmatprep.subr.bf16.mxu0 0
    %527 = vmatpush2.bf16.xpose.msra.mxu0 0
    %528 = vmatprep.mubr.bf16.mxu0 0
    %529 = vmatmul.mubr.bf16.gmra.mxu0 %v482
    %v530 = vpop.f32.mrf.mxu0
    %v531 = vadd.f32 0.0, %v530
    %v532 = vpop.f32.mrf.mxu0
    %v533 = vpop.f32.mrf.mxu0
    %v534 = vpop.f32.mrf.mxu0
    %535 = vdwg.mxu0
    %vm536 = vcmask 519168
    %v537 = vsel %vm536, %v476, -inf
    %538 = vmax.xlane.f32.xlu0 %v537
    %v539 = vpop.xlane.xlu0 %538
    %v540 = vsel %vm536, %v531, -inf
    %541 = vmax.xlane.f32.xlu0 %v540
    %v542 = vpop.xlane.xlu0 %541
    %v543 = vsub.f32 %v476, %v539
    %v544 = vsub.f32 %v531, %v542
    %v545 = vmul.f32 %v543, 1.442695
    %v546 = vpow.pop %v545
    %v547 = vmul.f32 %v544, 1.442695
    %v548 = vpow.pop %v547
    %v549 = vsel %vm536, %v546, 0.0
    %550 = vadd.xlane.f32.xlu0 %v549
    %v551 = vpop.xlane.xlu0 %550
    %v552 = vsel %vm536, %v548, 0.0
    %553 = vadd.xlane.f32.xlu0 %v552
    %v554 = vpop.xlane.xlu0 %553
    %v555 = vrcp.pop %v551
    %v556 = vmul.f32 %v546, %v555
    %v557 = vrcp.pop %v554
    %v558 = vmul.f32 %v548, %v557
    %v559 = vpack.c.bf16 %v556, %v556
    %v560 = vpack.c.bf16 %v558, %v558
    %vm561 = vcmask 523264
    %v563 = vsel %vm561, %v559, 0
    %565 = vmatprep.subr.bf16.mxu0 0
    %566 = vmatpush1.bf16.msra.mxu0 0
    %567 = vmatprep.subr.bf16.mxu0 0
    %568 = vmatpush1.bf16.msra.mxu0 0
    %569 = vmatprep.subr.bf16.mxu0 0
    %570 = vmatpush1.bf16.msra.mxu0 0
    %571 = vmatprep.subr.bf16.mxu0 0
    %572 = vmatpush1.bf16.msra.mxu0 0
    %573 = vmatprep.subr.bf16.mxu0 0
    %574 = vmatpush1.bf16.msra.mxu0 %v412
    %575 = vmatprep.subr.bf16.mxu0 0
    %576 = vmatpush1.bf16.msra.mxu0 %v411
    %577 = vmatprep.subr.bf16.mxu0 0
    %578 = vmatpush1.bf16.msra.mxu0 %v410
    %579 = vmatprep.subr.bf16.mxu0 0
    %580 = vmatpush1.bf16.msra.mxu0 %v409
    %581 = vmatprep.subr.bf16.mxu0 0
    %582 = vmatpush2.bf16.msra.mxu0 0
    %583 = vmatprep.subr.bf16.mxu0 0
    %584 = vmatpush2.bf16.msra.mxu0 0
    %585 = vmatprep.subr.bf16.mxu0 0
    %586 = vmatpush2.bf16.msra.mxu0 0
    %587 = vmatprep.subr.bf16.mxu0 0
    %588 = vmatpush2.bf16.msra.mxu0 0
    %589 = vmatprep.subr.bf16.mxu0 0
    %590 = vmatpush2.bf16.msra.mxu0 0
    %591 = vmatprep.subr.bf16.mxu0 0
    %592 = vmatpush2.bf16.msra.mxu0 0
    %593 = vmatprep.subr.bf16.mxu0 0
    %594 = vmatpush2.bf16.msra.mxu0 0
    %595 = vmatprep.subr.bf16.mxu0 0
    %596 = vmatpush2.bf16.msra.mxu0 0
    %597 = vmatprep.mubr.bf16.mxu0 0
    %598 = vmatmul.mubr.bf16.gmra.mxu0 %v563
    %v599 = vpop.f32.mrf.mxu0
    %v600 = vadd.f32 0.0, %v599
    %v601 = vpop.f32.mrf.mxu0
    %v602 = vpop.f32.mrf.mxu0
    %v603 = vpop.f32.mrf.mxu0
    %604 = vdwg.mxu0
    %v606 = vsel %vm561, %v560, 0
    %608 = vmatprep.subr.bf16.mxu0 0
    %609 = vmatpush1.bf16.msra.mxu0 0
    %610 = vmatprep.subr.bf16.mxu0 0
    %611 = vmatpush1.bf16.msra.mxu0 0
    %612 = vmatprep.subr.bf16.mxu0 0
    %613 = vmatpush1.bf16.msra.mxu0 0
    %614 = vmatprep.subr.bf16.mxu0 0
    %615 = vmatpush1.bf16.msra.mxu0 0
    %616 = vmatprep.subr.bf16.mxu0 0
    %617 = vmatpush1.bf16.msra.mxu0 %v416
    %618 = vmatprep.subr.bf16.mxu0 0
    %619 = vmatpush1.bf16.msra.mxu0 %v415
    %620 = vmatprep.subr.bf16.mxu0 0
    %621 = vmatpush1.bf16.msra.mxu0 %v414
    %622 = vmatprep.subr.bf16.mxu0 0
    %623 = vmatpush1.bf16.msra.mxu0 %v413
    %624 = vmatprep.subr.bf16.mxu0 0
    %625 = vmatpush2.bf16.msra.mxu0 0
    %626 = vmatprep.subr.bf16.mxu0 0
    %627 = vmatpush2.bf16.msra.mxu0 0
    %628 = vmatprep.subr.bf16.mxu0 0
    %629 = vmatpush2.bf16.msra.mxu0 0
    %630 = vmatprep.subr.bf16.mxu0 0
    %631 = vmatpush2.bf16.msra.mxu0 0
    %632 = vmatprep.subr.bf16.mxu0 0
    %633 = vmatpush2.bf16.msra.mxu0 0
    %634 = vmatprep.subr.bf16.mxu0 0
    %635 = vmatpush2.bf16.msra.mxu0 0
    %636 = vmatprep.subr.bf16.mxu0 0
    %637 = vmatpush2.bf16.msra.mxu0 0
    %638 = vmatprep.subr.bf16.mxu0 0
    %639 = vmatpush2.bf16.msra.mxu0 0
    %640 = vmatprep.mubr.bf16.mxu0 0
    %641 = vmatmul.mubr.bf16.gmra.mxu0 %v606
    %v642 = vpop.f32.mrf.mxu0
    %v643 = vadd.f32 0.0, %v642
    %v644 = vpop.f32.mrf.mxu0
    %v645 = vpop.f32.mrf.mxu0
    %v646 = vpop.f32.mrf.mxu0
    %647 = vdwg.mxu0
    %v648 = vadd.f32 %v419, %v600
    %v649 = vadd.f32 %v420, %v643
    %v650 = vpack.c.bf16 %v648, %v648
    %v651 = vpack.c.bf16 %v649, %v649
    %v652 = vld [vmem:[%s5] sm:$0xf]
    %v653 = vld [vmem:[%s5 + $0x4] sm:$0xf]
    %v654 = vld [vmem:[%s5 + $0x8] sm:$0xf]
    %v655 = vld [vmem:[%s5 + $0xc] sm:$0xf]
    %v658 = vcombine.low %v650, %v651
    %v660 = vunpack.c.l.s4 1983009808
    %v661 = vunpack.c.0.s8 %v660
    %v662 = vlaneseq
    %v663 = vshrl.u32 %v662, 7
    %v664 = vsub.s32 %v661, %v663
    %v665 = vrot.slane %v658, %v664
    %v670 = vunpack.c.l.b16 %v652
    %v671 = vunpack.c.l.b16 %v653
    %v672 = vunpack.c.l.b16 %v654
    %v673 = vunpack.c.l.b16 %v655
    %v674 = vpack.c.b16 %v671, %v670
    %v675 = vpack.c.b16 %v673, %v672
    %v679 = vsel %vm425, %v665, 0
    %681 = vmatprep.subr.bf16.mxu0 0
    %682 = vmatpush1.bf16.msra.mxu0 0
    %683 = vmatprep.subr.bf16.mxu0 0
    %684 = vmatpush1.bf16.msra.mxu0 0
    %685 = vmatprep.subr.bf16.mxu0 0
    %686 = vmatpush1.bf16.msra.mxu0 0
    %687 = vmatprep.subr.bf16.mxu0 0
    %688 = vmatpush1.bf16.msra.mxu0 0
    %689 = vmatprep.subr.bf16.mxu0 0
    %690 = vmatpush1.bf16.msra.mxu0 0
    %691 = vmatprep.subr.bf16.mxu0 0
    %692 = vmatpush1.bf16.msra.mxu0 0
    %693 = vmatprep.subr.bf16.mxu0 0
    %694 = vmatpush1.bf16.msra.mxu0 %v675
    %695 = vmatprep.subr.bf16.mxu0 0
    %696 = vmatpush1.bf16.msra.mxu0 %v674
    %697 = vmatprep.subr.bf16.mxu0 0
    %698 = vmatpush2.bf16.msra.mxu0 0
    %699 = vmatprep.subr.bf16.mxu0 0
    %700 = vmatpush2.bf16.msra.mxu0 0
    %701 = vmatprep.subr.bf16.mxu0 0
    %702 = vmatpush2.bf16.msra.mxu0 0
    %703 = vmatprep.subr.bf16.mxu0 0
    %704 = vmatpush2.bf16.msra.mxu0 0
    %705 = vmatprep.subr.bf16.mxu0 0
    %706 = vmatpush2.bf16.msra.mxu0 0
    %707 = vmatprep.subr.bf16.mxu0 0
    %708 = vmatpush2.bf16.msra.mxu0 0
    %709 = vmatprep.subr.bf16.mxu0 0
    %710 = vmatpush2.bf16.msra.mxu0 0
    %711 = vmatprep.subr.bf16.mxu0 0
    %712 = vmatpush2.bf16.msra.mxu0 0
    %713 = vmatprep.mubr.bf16.mxu0 0
    %714 = vmatmul.mubr.bf16.gmra.mxu0 %v679
    %v715 = vpop.f32.mrf.mxu0
    %v716 = vadd.f32 0.0, %v715
    %v717 = vpop.f32.mrf.mxu0
    %v718 = vpop.f32.mrf.mxu0
    %v719 = vpop.f32.mrf.mxu0
    %720 = vdwg.mxu0
    %721 = vst [vmem:[#allocation4] sm:$0xff] %v716
    // Predicated region
    $region67: #{_lambda_.3} parent=1 // pred_check
      _
    $region68: #{_lambda_.3} parent=1 // pred_check_branch
      %723 = sbr.rel (0) target = $region70
    $region69: #{_lambda_.3} parent=1 // pred_region
      %s725 = ssub.s32 128, 128
      %726 = vsyncadd [#allocation5], %s725
      %s728 = sshll.u32 [#allocation4], 4
      %s729 = int_to_ptr.vmem [resolvable:$true] %s728
      %731 = dma.vmem_to_hbm [thread:$0]  %s729, 128, %s6, [#allocation5]
    $region70: #{_lambda_.3} parent=1 // pred_fallthru
      _
    // Predicated region
    $region71: #{_lambda_.3} parent=1 // pred_check
      _
    $region72: #{_lambda_.3} parent=1 // pred_check_branch
      %733 = sbr.rel (0) target = $region74
    $region73: #{_lambda_.3} parent=1 // pred_region
      %734 = dma.done [#allocation5], 128
    $region74: #{_lambda_.3} parent=1 // pred_fallthru
      _
    %735 = vsyncpa [#allocation5], 1

</llo_original>
